<compile_context>
chip_gen: v7x
topology: tpu7x:2x2x1
jax: 0.10.0
libtpu: 0.0.40
codegen_flags: <defaults>
</compile_context>

<pallas_src>
import math
import jax
import jax.numpy as jnp
from jax.experimental import pallas as pl
from jax.experimental.pallas import tpu as pltpu


def gru_layer_kernel(gi_ref, h0_ref, whh_ref, bhn_ref, out_ref, hfin_ref):
    """Serial GRU recurrence for one direction (grid axis 0 = direction)."""
    d = pl.program_id(0)          # 0 = forward, 1 = backward
    S = out_ref.shape[0]
    H = out_ref.shape[-1]

    whh = whh_ref[...]            # (H, 3H)  resident for the whole recurrence
    bhn = bhn_ref[...]            # (1, H)   b_hn (the only non-foldable bias)

    def step(i, h):
        # Backward direction walks time in reverse via a dynamic index
        # (no reversed copies in HBM).
        t = jnp.where(d == 1, S - 1 - i, i)
        gi = gi_ref[t]            # (B, 3H)  precomputed W_ih x + folded biases
        gh = jnp.dot(h, whh, preferred_element_type=jnp.float32)   # (B, 3H)
        r = jax.nn.sigmoid(gi[:, :H] + gh[:, :H])
        z = jax.nn.sigmoid(gi[:, H:2 * H] + gh[:, H:2 * H])
        n = jnp.tanh(gi[:, 2 * H:] + r * (gh[:, 2 * H:] + bhn))
        h_new = (1.0 - z) * n + z * h
        out_ref[t] = h_new.astype(out_ref.dtype)
        return h_new

    h_last = jax.lax.fori_loop(0, S, step, h0_ref[...], unroll=True)
    hfin_ref[...] = h_last.astype(hfin_ref.dtype)


def gru_recurrence(gi_all, h0, whh_t, bhh_n):
    """Recurrent part of one (possibly bidirectional) GRU layer.

    gi_all: (D, S, B, 3H) precomputed input projections (biases folded)
    h0:     (D, B, H)     initial hidden per direction
    whh_t:  (D, H, 3H)    recurrent weights, transposed
    bhh_n:  (D, 1, H)     n-gate recurrent bias
    returns out (D, S, B, H), h_fin (D, B, H)
    """
    D, S, B, G = gi_all.shape
    H = h0.shape[-1]
    out, h_fin = pl.pallas_call(
        gru_layer_kernel,
        out_shape=(jax.ShapeDtypeStruct((D, S, B, H), jnp.float32),
                   jax.ShapeDtypeStruct((D, B, H), jnp.float32)),
        grid_spec=pltpu.PrefetchScalarGridSpec(
            num_scalar_prefetch=0,
            grid=(D,),
            in_specs=[
                pl.BlockSpec((None, S, B, G), lambda d: (d, 0, 0, 0)),  # gi
                pl.BlockSpec((None, B, H), lambda d: (d, 0, 0)),        # h0
                pl.BlockSpec((None, H, G), lambda d: (d, 0, 0)),        # W_hh^T
                pl.BlockSpec((None, 1, H), lambda d: (d, 0, 0)),        # b_hn
            ],
            out_specs=[
                pl.BlockSpec((None, S, B, H), lambda d: (d, 0, 0, 0)),  # outputs
                pl.BlockSpec((None, B, H), lambda d: (d, 0, 0)),        # final h
            ],
        ),
        # Direction axis is fully independent -> "parallel"; on v7x the two
        # directions can run on the two TensorCores, harmless on v5e/v6e.
        compiler_params=pltpu.CompilerParams(
            dimension_semantics=("parallel",)),
    )(gi_all, h0, whh_t, bhh_n)
    return out, h_fin


class EncoderRNNPallas:
    """JAX/Pallas port of EncoderRNN(typecell='gru', bidirectional=True)."""

    def __init__(self, input_size, hidden_size, embedding_size, num_layers,
                 typecell, dropout, bidirectional, key):
        assert typecell == "gru", "only the GRU cell is implemented"
        self.hidden_size = hidden_size
        self.num_layers = num_layers
        self.bidirectional = bidirectional
        self.num_dirs = 2 if bidirectional else 1
        self.p = dropout
        # TODO(synk): nn.Dropout with p>0 (stochastic masking) not implemented; p=0 used.

        H = hidden_size
        D = self.num_dirs
        keys = jax.random.split(key, 1 + 4 * num_layers * D)
        self.embedding = jax.random.normal(
            keys[0], (input_size, embedding_size), dtype=jnp.float32)

        k = 1.0 / math.sqrt(H)
        self.layers = []       # fused/folded parameters used by the kernel path
        self.raw_layers = []   # raw PyTorch-style parameters (reference check)
        ki = 1
        for layer in range(num_layers):
            in_dim = embedding_size if layer == 0 else H * D
            wih_t_dirs, bias_dirs, whh_t_dirs, bhn_dirs, raw_dirs = [], [], [], [], []
            for _ in range(D):
                w_ih = jax.random.uniform(keys[ki + 0], (3 * H, in_dim),
                                          minval=-k, maxval=k, dtype=jnp.float32)
                w_hh = jax.random.uniform(keys[ki + 1], (3 * H, H),
                                          minval=-k, maxval=k, dtype=jnp.float32)
                b_ih = jax.random.uniform(keys[ki + 2], (3 * H,),
                                          minval=-k, maxval=k, dtype=jnp.float32)
                b_hh = jax.random.uniform(keys[ki + 3], (3 * H,),
                                          minval=-k, maxval=k, dtype=jnp.float32)
                ki += 4
                raw_dirs.append((w_ih, w_hh, b_ih, b_hh))
                wih_t_dirs.append(jnp.transpose(w_ih))                  # (in_dim, 3H)
                # Fold b_ih (all gates) + b_hh (r,z gates) into the hoisted gi.
                bias_dirs.append(b_ih + jnp.concatenate(
                    [b_hh[:2 * H], jnp.zeros((H,), jnp.float32)]))
                whh_t_dirs.append(jnp.transpose(w_hh))                  # (H, 3H)
                bhn_dirs.append(b_hh[2 * H:][None, :])                  # (1, H)
            self.layers.append((
                jnp.concatenate(wih_t_dirs, axis=1),   # (in_dim, D*3H)
                jnp.concatenate(bias_dirs, axis=0),    # (D*3H,)
                jnp.stack(whh_t_dirs, axis=0),         # (D, H, 3H)
                jnp.stack(bhn_dirs, axis=0),           # (D, 1, H)
            ))
            self.raw_layers.append(raw_dirs)

    def forward(self, inp, hidden):
        # inp: (S, B) int32 ; hidden: (num_layers*num_dirs, B, H)
        S, B = inp.shape
        D, H = self.num_dirs, self.hidden_size
        # TODO(synk): embedding gather kept as plain-JAX glue (XLA gather).
        embedded = jnp.take(self.embedding, inp, axis=0)    # (S, B, E)
        x_dirs = embedded[None]                             # (1, S, B, E); dropout(p=0)==id

        h_finals = []
        for layer_idx, (wih_t, bias, whh_t, bhh_n) in enumerate(self.layers):
            Din, _, _, F = x_dirs.shape
            # Hoisted input projection: one big MXU matmul over all timesteps
            # and both output directions, with b_ih + b_hh(r,z) folded in.
            # Consuming the previous layer's per-direction outputs through a
            # direction-split weight avoids materializing the (S,B,D*H) concat.
            gi = jnp.einsum("dsbf,dfg->sbg", x_dirs,
                            wih_t.reshape(Din, F, D * 3 * H)) + bias
            gi = gi.reshape(S, B, D, 3 * H).transpose(2, 0, 1, 3)   # (D, S, B, 3H)

            h0 = hidden[layer_idx * D:(layer_idx + 1) * D]          # (D, B, H)
            out, h_fin = gru_recurrence(gi, h0, whh_t, bhh_n)
            h_finals.append(h_fin)
            x_dirs = out    # (D, S, B, H) feeds next layer (inter-layer dropout p=0)

        output = jnp.transpose(x_dirs, (1, 2, 0, 3)).reshape(S, B, D * H)
        hidden_out = jnp.concatenate(h_finals, axis=0)   # (num_layers*D, B, H)
        return output, hidden_out

    def initHidden(self, batch_size):
        return jnp.zeros((self.num_layers * self.num_dirs, batch_size,
                          self.hidden_size), jnp.float32)


def reference_forward(enc, inp, hidden):
    """Pure-JAX, PyTorch-faithful GRU (no folding/fusion) for correctness check."""
    S, B = inp.shape
    D, H = enc.num_dirs, enc.hidden_size
    x = jnp.take(enc.embedding, inp, axis=0)
    h_finals = []
    for layer_idx, raw_dirs in enumerate(enc.raw_layers):
        dir_outs = []
        for d, (w_ih, w_hh, b_ih, b_hh) in enumerate(raw_dirs):
            h = hidden[layer_idx * D + d]
            order = range(S - 1, -1, -1) if d == 1 else range(S)
            outs = [None] * S
            for t in order:
                gi = x[t] @ w_ih.T + b_ih
                gh = h @ w_hh.T + b_hh
                r = jax.nn.sigmoid(gi[:, :H] + gh[:, :H])
                z = jax.nn.sigmoid(gi[:, H:2 * H] + gh[:, H:2 * H])
                n = jnp.tanh(gi[:, 2 * H:] + r * gh[:, 2 * H:])
                h = (1.0 - z) * n + z * h
                outs[t] = h
            dir_outs.append(jnp.stack(outs, 0))
            h_finals.append(h)
        x = jnp.concatenate(dir_outs, axis=-1)
    return x, jnp.stack(h_finals, 0)


if __name__ == "__main__":
    SEQ, BATCH = 8, 4
    VOCAB, EMB, HIDDEN, NUM_LAYERS = 50, 16, 32, 2

    key = jax.random.PRNGKey(0)
    k_param, k_inp = jax.random.split(key)

    enc = EncoderRNNPallas(input_size=VOCAB, hidden_size=HIDDEN,
                           embedding_size=EMB, num_layers=NUM_LAYERS,
                           typecell="gru", dropout=0.0, bidirectional=True,
                           key=k_param)

    inp = jax.random.randint(k_inp, (SEQ, BATCH), 0, VOCAB, dtype=jnp.int32)
    hidden0 = enc.initHidden(BATCH)

    output, hidden = enc.forward(inp, hidden0)
    jax.block_until_ready((output, hidden))

    assert output.shape == (SEQ, BATCH, 2 * HIDDEN)
    assert hidden.shape == (NUM_LAYERS * 2, BATCH, HIDDEN)

    # Numerical cross-check against a plain-JAX PyTorch-faithful GRU.
    ref_out, ref_hid = reference_forward(enc, inp, hidden0)
    assert jnp.allclose(output, ref_out, atol=2e-5, rtol=2e-5), "output mismatch"
    assert jnp.allclose(hidden, ref_hid, atol=2e-5, rtol=2e-5), "hidden mismatch"

    print("KERNEL_OK")
</pallas_src>

<mosaic_0001>
module attributes {stable_mosaic.version = 11 : i64} {
  func.func @gru_layer_kernel(%arg0: i32, %arg1: memref<1x8x4x96xf32, #tpu.memory_space<vmem>>, %arg2: memref<1x4x32xf32, #tpu.memory_space<vmem>>, %arg3: memref<1x32x96xf32, #tpu.memory_space<vmem>>, %arg4: memref<1x1x32xf32, #tpu.memory_space<vmem>>, %arg5: memref<1x8x4x32xf32, #tpu.memory_space<vmem>>, %arg6: memref<1x4x32xf32, #tpu.memory_space<vmem>>) attributes {dimension_semantics = [#tpu.dimension_semantics<parallel>], iteration_bounds = array<i64: 2>, scalar_prefetch = 0 : i64, scratch_operands = 0 : i64, tpu.core_type = #tpu.core_type<tc>, window_params = [{transform_indices = @transform_0, window_bounds = array<i64: 1, 8, 4, 96>}, {transform_indices = @transform_1, window_bounds = array<i64: 1, 4, 32>}, {transform_indices = @transform_2, window_bounds = array<i64: 1, 32, 96>}, {transform_indices = @transform_3, window_bounds = array<i64: 1, 1, 32>}, {transform_indices = @transform_4, window_bounds = array<i64: 1, 8, 4, 32>}, {transform_indices = @transform_5, window_bounds = array<i64: 1, 4, 32>}]} {
    %c0 = arith.constant 0 : index
    %c0_0 = arith.constant 0 : index
    %c0_1 = arith.constant 0 : index
    %0 = vector.load %arg3[%c0, %c0_0, %c0_1] : memref<1x32x96xf32, #tpu.memory_space<vmem>>, vector<1x32x96xf32>
    %1 = vector.shape_cast %0 : vector<1x32x96xf32> to vector<32x96xf32>
    %c0_2 = arith.constant 0 : index
    %c0_3 = arith.constant 0 : index
    %c0_4 = arith.constant 0 : index
    %2 = vector.load %arg4[%c0_2, %c0_3, %c0_4] : memref<1x1x32xf32, #tpu.memory_space<vmem>>, vector<1x1x32xf32>
    %3 = vector.shape_cast %2 : vector<1x1x32xf32> to vector<1x32xf32>
    %c0_5 = arith.constant 0 : index
    %c0_6 = arith.constant 0 : index
    %c0_7 = arith.constant 0 : index
    %4 = vector.load %arg2[%c0_5, %c0_6, %c0_7] : memref<1x4x32xf32, #tpu.memory_space<vmem>>, vector<1x4x32xf32>
    %5 = vector.shape_cast %4 : vector<1x4x32xf32> to vector<4x32xf32>
    %c0_i32 = arith.constant 0 : i32
    %c1_i32 = arith.constant 1 : i32
    %6 = arith.cmpi eq, %arg0, %c1_i32 : i32
    %c7_i32 = arith.constant 7 : i32
    %7 = arith.subi %c7_i32, %c0_i32 : i32
    %8 = arith.select %6, %7, %c0_i32 : i32
    %c0_8 = arith.constant 0 : index
    %9 = arith.index_cast %8 : i32 to index
    %c0_9 = arith.constant 0 : index
    %c0_10 = arith.constant 0 : index
    %10 = vector.load %arg1[%c0_8, %9, %c0_9, %c0_10] : memref<1x8x4x96xf32, #tpu.memory_space<vmem>>, vector<1x1x4x96xf32>
    %11 = vector.shape_cast %10 : vector<1x1x4x96xf32> to vector<4x96xf32>
    %cst = arith.constant dense<0.000000e+00> : vector<4x96xf32>
    %12 = tpu.matmul %5, %1, %cst {dimension_numbers = #tpu.dot_dimension_numbers<[1], [0], [0], [1], [0, 0, 1, 1], [], []>} : vector<4x32xf32>, vector<32x96xf32>, vector<4x96xf32> -> vector<4x96xf32>
    %13 = vector.extract_strided_slice %11 {offsets = [0, 0], sizes = [4, 32], strides = [1, 1]} : vector<4x96xf32> to vector<4x32xf32>
    %14 = vector.extract_strided_slice %12 {offsets = [0, 0], sizes = [4, 32], strides = [1, 1]} : vector<4x96xf32> to vector<4x32xf32>
    %15 = arith.addf %13, %14 : vector<4x32xf32>
    %16 = arith.negf %15 : vector<4x32xf32>
    %17 = math.exp %16 : vector<4x32xf32>
    %cst_11 = arith.constant 1.000000e+00 : f32
    %18 = vector.broadcast %cst_11 : f32 to vector<4x32xf32>
    %19 = arith.addf %18, %17 : vector<4x32xf32>
    %20 = arith.divf %18, %19 : vector<4x32xf32>
    %21 = vector.extract_strided_slice %11 {offsets = [0, 32], sizes = [4, 32], strides = [1, 1]} : vector<4x96xf32> to vector<4x32xf32>
    %22 = vector.extract_strided_slice %12 {offsets = [0, 32], sizes = [4, 32], strides = [1, 1]} : vector<4x96xf32> to vector<4x32xf32>
    %23 = arith.addf %21, %22 : vector<4x32xf32>
    %24 = arith.negf %23 : vector<4x32xf32>
    %25 = math.exp %24 : vector<4x32xf32>
    %cst_12 = arith.constant 1.000000e+00 : f32
    %26 = vector.broadcast %cst_12 : f32 to vector<4x32xf32>
    %27 = arith.addf %26, %25 : vector<4x32xf32>
    %28 = arith.divf %26, %27 : vector<4x32xf32>
    %29 = vector.extract_strided_slice %11 {offsets = [0, 64], sizes = [4, 32], strides = [1, 1]} : vector<4x96xf32> to vector<4x32xf32>
    %30 = vector.extract_strided_slice %12 {offsets = [0, 64], sizes = [4, 32], strides = [1, 1]} : vector<4x96xf32> to vector<4x32xf32>
    %31 = vector.broadcast %3 : vector<1x32xf32> to vector<4x32xf32>
    %32 = arith.addf %30, %31 : vector<4x32xf32>
    %33 = arith.mulf %20, %32 : vector<4x32xf32>
    %34 = arith.addf %29, %33 : vector<4x32xf32>
    %35 = math.tanh %34 : vector<4x32xf32>
    %cst_13 = arith.constant 1.000000e+00 : f32
    %36 = vector.broadcast %cst_13 : f32 to vector<4x32xf32>
    %37 = arith.subf %36, %28 : vector<4x32xf32>
    %38 = arith.mulf %37, %35 : vector<4x32xf32>
    %39 = arith.mulf %28, %5 : vector<4x32xf32>
    %40 = arith.addf %38, %39 : vector<4x32xf32>
    %c0_14 = arith.constant 0 : index
    %41 = arith.index_cast %8 : i32 to index
    %c0_15 = arith.constant 0 : index
    %c0_16 = arith.constant 0 : index
    %42 = vector.load %arg5[%c0_14, %41, %c0_15, %c0_16] : memref<1x8x4x32xf32, #tpu.memory_space<vmem>>, vector<1x1x4x32xf32>
    %43 = vector.shape_cast %42 : vector<1x1x4x32xf32> to vector<4x32xf32>
    %44 = vector.shape_cast %40 : vector<4x32xf32> to vector<1x1x4x32xf32>
    tpu.vector_store %arg5[%c0_14, %41, %c0_15, %c0_16], %44 {strides = array<i32>} : memref<1x8x4x32xf32, #tpu.memory_space<vmem>>, vector<1x1x4x32xf32>,
    %c1_i32_17 = arith.constant 1 : i32
    %c1_i32_18 = arith.constant 1 : i32
    %45 = arith.cmpi eq, %arg0, %c1_i32_18 : i32
    %c7_i32_19 = arith.constant 7 : i32
    %46 = arith.subi %c7_i32_19, %c1_i32_17 : i32
    %47 = arith.select %45, %46, %c1_i32_17 : i32
    %c0_20 = arith.constant 0 : index
    %48 = arith.index_cast %47 : i32 to index
    %c0_21 = arith.constant 0 : index
    %c0_22 = arith.constant 0 : index
    %49 = vector.load %arg1[%c0_20, %48, %c0_21, %c0_22] : memref<1x8x4x96xf32, #tpu.memory_space<vmem>>, vector<1x1x4x96xf32>
    %50 = vector.shape_cast %49 : vector<1x1x4x96xf32> to vector<4x96xf32>
    %cst_23 = arith.constant dense<0.000000e+00> : vector<4x96xf32>
    %51 = tpu.matmul %40, %1, %cst_23 {dimension_numbers = #tpu.dot_dimension_numbers<[1], [0], [0], [1], [0, 0, 1, 1], [], []>} : vector<4x32xf32>, vector<32x96xf32>, vector<4x96xf32> -> vector<4x96xf32>
    %52 = vector.extract_strided_slice %50 {offsets = [0, 0], sizes = [4, 32], strides = [1, 1]} : vector<4x96xf32> to vector<4x32xf32>
    %53 = vector.extract_strided_slice %51 {offsets = [0, 0], sizes = [4, 32], strides = [1, 1]} : vector<4x96xf32> to vector<4x32xf32>
    %54 = arith.addf %52, %53 : vector<4x32xf32>
    %55 = arith.negf %54 : vector<4x32xf32>
    %56 = math.exp %55 : vector<4x32xf32>
    %cst_24 = arith.constant 1.000000e+00 : f32
    %57 = vector.broadcast %cst_24 : f32 to vector<4x32xf32>
    %58 = arith.addf %57, %56 : vector<4x32xf32>
    %59 = arith.divf %57, %58 : vector<4x32xf32>
    %60 = vector.extract_strided_slice %50 {offsets = [0, 32], sizes = [4, 32], strides = [1, 1]} : vector<4x96xf32> to vector<4x32xf32>
    %61 = vector.extract_strided_slice %51 {offsets = [0, 32], sizes = [4, 32], strides = [1, 1]} : vector<4x96xf32> to vector<4x32xf32>
    %62 = arith.addf %60, %61 : vector<4x32xf32>
    %63 = arith.negf %62 : vector<4x32xf32>
    %64 = math.exp %63 : vector<4x32xf32>
    %cst_25 = arith.constant 1.000000e+00 : f32
    %65 = vector.broadcast %cst_25 : f32 to vector<4x32xf32>
    %66 = arith.addf %65, %64 : vector<4x32xf32>
    %67 = arith.divf %65, %66 : vector<4x32xf32>
    %68 = vector.extract_strided_slice %50 {offsets = [0, 64], sizes = [4, 32], strides = [1, 1]} : vector<4x96xf32> to vector<4x32xf32>
    %69 = vector.extract_strided_slice %51 {offsets = [0, 64], sizes = [4, 32], strides = [1, 1]} : vector<4x96xf32> to vector<4x32xf32>
    %70 = vector.broadcast %3 : vector<1x32xf32> to vector<4x32xf32>
    %71 = arith.addf %69, %70 : vector<4x32xf32>
    %72 = arith.mulf %59, %71 : vector<4x32xf32>
    %73 = arith.addf %68, %72 : vector<4x32xf32>
    %74 = math.tanh %73 : vector<4x32xf32>
    %cst_26 = arith.constant 1.000000e+00 : f32
    %75 = vector.broadcast %cst_26 : f32 to vector<4x32xf32>
    %76 = arith.subf %75, %67 : vector<4x32xf32>
    %77 = arith.mulf %76, %74 : vector<4x32xf32>
    %78 = arith.mulf %67, %40 : vector<4x32xf32>
    %79 = arith.addf %77, %78 : vector<4x32xf32>
    %c0_27 = arith.constant 0 : index
    %80 = arith.index_cast %47 : i32 to index
    %c0_28 = arith.constant 0 : index
    %c0_29 = arith.constant 0 : index
    %81 = vector.load %arg5[%c0_27, %80, %c0_28, %c0_29] : memref<1x8x4x32xf32, #tpu.memory_space<vmem>>, vector<1x1x4x32xf32>
    %82 = vector.shape_cast %81 : vector<1x1x4x32xf32> to vector<4x32xf32>
    %83 = vector.shape_cast %79 : vector<4x32xf32> to vector<1x1x4x32xf32>
    tpu.vector_store %arg5[%c0_27, %80, %c0_28, %c0_29], %83 {strides = array<i32>} : memref<1x8x4x32xf32, #tpu.memory_space<vmem>>, vector<1x1x4x32xf32>,
    %c2_i32 = arith.constant 2 : i32
    %c1_i32_30 = arith.constant 1 : i32
    %84 = arith.cmpi eq, %arg0, %c1_i32_30 : i32
    %c7_i32_31 = arith.constant 7 : i32
    %85 = arith.subi %c7_i32_31, %c2_i32 : i32
    %86 = arith.select %84, %85, %c2_i32 : i32
    %c0_32 = arith.constant 0 : index
    %87 = arith.index_cast %86 : i32 to index
    %c0_33 = arith.constant 0 : index
    %c0_34 = arith.constant 0 : index
    %88 = vector.load %arg1[%c0_32, %87, %c0_33, %c0_34] : memref<1x8x4x96xf32, #tpu.memory_space<vmem>>, vector<1x1x4x96xf32>
    %89 = vector.shape_cast %88 : vector<1x1x4x96xf32> to vector<4x96xf32>
    %cst_35 = arith.constant dense<0.000000e+00> : vector<4x96xf32>
    %90 = tpu.matmul %79, %1, %cst_35 {dimension_numbers = #tpu.dot_dimension_numbers<[1], [0], [0], [1], [0, 0, 1, 1], [], []>} : vector<4x32xf32>, vector<32x96xf32>, vector<4x96xf32> -> vector<4x96xf32>
    %91 = vector.extract_strided_slice %89 {offsets = [0, 0], sizes = [4, 32], strides = [1, 1]} : vector<4x96xf32> to vector<4x32xf32>
    %92 = vector.extract_strided_slice %90 {offsets = [0, 0], sizes = [4, 32], strides = [1, 1]} : vector<4x96xf32> to vector<4x32xf32>
    %93 = arith.addf %91, %92 : vector<4x32xf32>
    %94 = arith.negf %93 : vector<4x32xf32>
    %95 = math.exp %94 : vector<4x32xf32>
    %cst_36 = arith.constant 1.000000e+00 : f32
    %96 = vector.broadcast %cst_36 : f32 to vector<4x32xf32>
    %97 = arith.addf %96, %95 : vector<4x32xf32>
    %98 = arith.divf %96, %97 : vector<4x32xf32>
    %99 = vector.extract_strided_slice %89 {offsets = [0, 32], sizes = [4, 32], strides = [1, 1]} : vector<4x96xf32> to vector<4x32xf32>
    %100 = vector.extract_strided_slice %90 {offsets = [0, 32], sizes = [4, 32], strides = [1, 1]} : vector<4x96xf32> to vector<4x32xf32>
    %101 = arith.addf %99, %100 : vector<4x32xf32>
    %102 = arith.negf %101 : vector<4x32xf32>
    %103 = math.exp %102 : vector<4x32xf32>
    %cst_37 = arith.constant 1.000000e+00 : f32
    %104 = vector.broadcast %cst_37 : f32 to vector<4x32xf32>
    %105 = arith.addf %104, %103 : vector<4x32xf32>
    %106 = arith.divf %104, %105 : vector<4x32xf32>
    %107 = vector.extract_strided_slice %89 {offsets = [0, 64], sizes = [4, 32], strides = [1, 1]} : vector<4x96xf32> to vector<4x32xf32>
    %108 = vector.extract_strided_slice %90 {offsets = [0, 64], sizes = [4, 32], strides = [1, 1]} : vector<4x96xf32> to vector<4x32xf32>
    %109 = vector.broadcast %3 : vector<1x32xf32> to vector<4x32xf32>
    %110 = arith.addf %108, %109 : vector<4x32xf32>
    %111 = arith.mulf %98, %110 : vector<4x32xf32>
    %112 = arith.addf %107, %111 : vector<4x32xf32>
    %113 = math.tanh %112 : vector<4x32xf32>
    %cst_38 = arith.constant 1.000000e+00 : f32
    %114 = vector.broadcast %cst_38 : f32 to vector<4x32xf32>
    %115 = arith.subf %114, %106 : vector<4x32xf32>
    %116 = arith.mulf %115, %113 : vector<4x32xf32>
    %117 = arith.mulf %106, %79 : vector<4x32xf32>
    %118 = arith.addf %116, %117 : vector<4x32xf32>
    %c0_39 = arith.constant 0 : index
    %119 = arith.index_cast %86 : i32 to index
    %c0_40 = arith.constant 0 : index
    %c0_41 = arith.constant 0 : index
    %120 = vector.load %arg5[%c0_39, %119, %c0_40, %c0_41] : memref<1x8x4x32xf32, #tpu.memory_space<vmem>>, vector<1x1x4x32xf32>
    %121 = vector.shape_cast %120 : vector<1x1x4x32xf32> to vector<4x32xf32>
    %122 = vector.shape_cast %118 : vector<4x32xf32> to vector<1x1x4x32xf32>
    tpu.vector_store %arg5[%c0_39, %119, %c0_40, %c0_41], %122 {strides = array<i32>} : memref<1x8x4x32xf32, #tpu.memory_space<vmem>>, vector<1x1x4x32xf32>,
    %c3_i32 = arith.constant 3 : i32
    %c1_i32_42 = arith.constant 1 : i32
    %123 = arith.cmpi eq, %arg0, %c1_i32_42 : i32
    %c7_i32_43 = arith.constant 7 : i32
    %124 = arith.subi %c7_i32_43, %c3_i32 : i32
    %125 = arith.select %123, %124, %c3_i32 : i32
    %c0_44 = arith.constant 0 : index
    %126 = arith.index_cast %125 : i32 to index
    %c0_45 = arith.constant 0 : index
    %c0_46 = arith.constant 0 : index
    %127 = vector.load %arg1[%c0_44, %126, %c0_45, %c0_46] : memref<1x8x4x96xf32, #tpu.memory_space<vmem>>, vector<1x1x4x96xf32>
    %128 = vector.shape_cast %127 : vector<1x1x4x96xf32> to vector<4x96xf32>
    %cst_47 = arith.constant dense<0.000000e+00> : vector<4x96xf32>
    %129 = tpu.matmul %118, %1, %cst_47 {dimension_numbers = #tpu.dot_dimension_numbers<[1], [0], [0], [1], [0, 0, 1, 1], [], []>} : vector<4x32xf32>, vector<32x96xf32>, vector<4x96xf32> -> vector<4x96xf32>
    %130 = vector.extract_strided_slice %128 {offsets = [0, 0], sizes = [4, 32], strides = [1, 1]} : vector<4x96xf32> to vector<4x32xf32>
    %131 = vector.extract_strided_slice %129 {offsets = [0, 0], sizes = [4, 32], strides = [1, 1]} : vector<4x96xf32> to vector<4x32xf32>
    %132 = arith.addf %130, %131 : vector<4x32xf32>
    %133 = arith.negf %132 : vector<4x32xf32>
    %134 = math.exp %133 : vector<4x32xf32>
    %cst_48 = arith.constant 1.000000e+00 : f32
    %135 = vector.broadcast %cst_48 : f32 to vector<4x32xf32>
    %136 = arith.addf %135, %134 : vector<4x32xf32>
    %137 = arith.divf %135, %136 : vector<4x32xf32>
    %138 = vector.extract_strided_slice %128 {offsets = [0, 32], sizes = [4, 32], strides = [1, 1]} : vector<4x96xf32> to vector<4x32xf32>
    %139 = vector.extract_strided_slice %129 {offsets = [0, 32], sizes = [4, 32], strides = [1, 1]} : vector<4x96xf32> to vector<4x32xf32>
    %140 = arith.addf %138, %139 : vector<4x32xf32>
    %141 = arith.negf %140 : vector<4x32xf32>
    %142 = math.exp %141 : vector<4x32xf32>
    %cst_49 = arith.constant 1.000000e+00 : f32
    %143 = vector.broadcast %cst_49 : f32 to vector<4x32xf32>
    %144 = arith.addf %143, %142 : vector<4x32xf32>
    %145 = arith.divf %143, %144 : vector<4x32xf32>
    %146 = vector.extract_strided_slice %128 {offsets = [0, 64], sizes = [4, 32], strides = [1, 1]} : vector<4x96xf32> to vector<4x32xf32>
    %147 = vector.extract_strided_slice %129 {offsets = [0, 64], sizes = [4, 32], strides = [1, 1]} : vector<4x96xf32> to vector<4x32xf32>
    %148 = vector.broadcast %3 : vector<1x32xf32> to vector<4x32xf32>
    %149 = arith.addf %147, %148 : vector<4x32xf32>
    %150 = arith.mulf %137, %149 : vector<4x32xf32>
    %151 = arith.addf %146, %150 : vector<4x32xf32>
    %152 = math.tanh %151 : vector<4x32xf32>
    %cst_50 = arith.constant 1.000000e+00 : f32
    %153 = vector.broadcast %cst_50 : f32 to vector<4x32xf32>
    %154 = arith.subf %153, %145 : vector<4x32xf32>
    %155 = arith.mulf %154, %152 : vector<4x32xf32>
    %156 = arith.mulf %145, %118 : vector<4x32xf32>
    %157 = arith.addf %155, %156 : vector<4x32xf32>
    %c0_51 = arith.constant 0 : index
    %158 = arith.index_cast %125 : i32 to index
    %c0_52 = arith.constant 0 : index
    %c0_53 = arith.constant 0 : index
    %159 = vector.load %arg5[%c0_51, %158, %c0_52, %c0_53] : memref<1x8x4x32xf32, #tpu.memory_space<vmem>>, vector<1x1x4x32xf32>
    %160 = vector.shape_cast %159 : vector<1x1x4x32xf32> to vector<4x32xf32>
    %161 = vector.shape_cast %157 : vector<4x32xf32> to vector<1x1x4x32xf32>
    tpu.vector_store %arg5[%c0_51, %158, %c0_52, %c0_53], %161 {strides = array<i32>} : memref<1x8x4x32xf32, #tpu.memory_space<vmem>>, vector<1x1x4x32xf32>,
    %c4_i32 = arith.constant 4 : i32
    %c1_i32_54 = arith.constant 1 : i32
    %162 = arith.cmpi eq, %arg0, %c1_i32_54 : i32
    %c7_i32_55 = arith.constant 7 : i32
    %163 = arith.subi %c7_i32_55, %c4_i32 : i32
    %164 = arith.select %162, %163, %c4_i32 : i32
    %c0_56 = arith.constant 0 : index
    %165 = arith.index_cast %164 : i32 to index
    %c0_57 = arith.constant 0 : index
    %c0_58 = arith.constant 0 : index
    %166 = vector.load %arg1[%c0_56, %165, %c0_57, %c0_58] : memref<1x8x4x96xf32, #tpu.memory_space<vmem>>, vector<1x1x4x96xf32>
    %167 = vector.shape_cast %166 : vector<1x1x4x96xf32> to vector<4x96xf32>
    %cst_59 = arith.constant dense<0.000000e+00> : vector<4x96xf32>
    %168 = tpu.matmul %157, %1, %cst_59 {dimension_numbers = #tpu.dot_dimension_numbers<[1], [0], [0], [1], [0, 0, 1, 1], [], []>} : vector<4x32xf32>, vector<32x96xf32>, vector<4x96xf32> -> vector<4x96xf32>
    %169 = vector.extract_strided_slice %167 {offsets = [0, 0], sizes = [4, 32], strides = [1, 1]} : vector<4x96xf32> to vector<4x32xf32>
    %170 = vector.extract_strided_slice %168 {offsets = [0, 0], sizes = [4, 32], strides = [1, 1]} : vector<4x96xf32> to vector<4x32xf32>
    %171 = arith.addf %169, %170 : vector<4x32xf32>
    %172 = arith.negf %171 : vector<4x32xf32>
    %173 = math.exp %172 : vector<4x32xf32>
    %cst_60 = arith.constant 1.000000e+00 : f32
    %174 = vector.broadcast %cst_60 : f32 to vector<4x32xf32>
    %175 = arith.addf %174, %173 : vector<4x32xf32>
    %176 = arith.divf %174, %175 : vector<4x32xf32>
    %177 = vector.extract_strided_slice %167 {offsets = [0, 32], sizes = [4, 32], strides = [1, 1]} : vector<4x96xf32> to vector<4x32xf32>
    %178 = vector.extract_strided_slice %168 {offsets = [0, 32], sizes = [4, 32], strides = [1, 1]} : vector<4x96xf32> to vector<4x32xf32>
    %179 = arith.addf %177, %178 : vector<4x32xf32>
    %180 = arith.negf %179 : vector<4x32xf32>
    %181 = math.exp %180 : vector<4x32xf32>
    %cst_61 = arith.constant 1.000000e+00 : f32
    %182 = vector.broadcast %cst_61 : f32 to vector<4x32xf32>
    %183 = arith.addf %182, %181 : vector<4x32xf32>
    %184 = arith.divf %182, %183 : vector<4x32xf32>
    %185 = vector.extract_strided_slice %167 {offsets = [0, 64], sizes = [4, 32], strides = [1, 1]} : vector<4x96xf32> to vector<4x32xf32>
    %186 = vector.extract_strided_slice %168 {offsets = [0, 64], sizes = [4, 32], strides = [1, 1]} : vector<4x96xf32> to vector<4x32xf32>
    %187 = vector.broadcast %3 : vector<1x32xf32> to vector<4x32xf32>
    %188 = arith.addf %186, %187 : vector<4x32xf32>
    %189 = arith.mulf %176, %188 : vector<4x32xf32>
    %190 = arith.addf %185, %189 : vector<4x32xf32>
    %191 = math.tanh %190 : vector<4x32xf32>
    %cst_62 = arith.constant 1.000000e+00 : f32
    %192 = vector.broadcast %cst_62 : f32 to vector<4x32xf32>
    %193 = arith.subf %192, %184 : vector<4x32xf32>
    %194 = arith.mulf %193, %191 : vector<4x32xf32>
    %195 = arith.mulf %184, %157 : vector<4x32xf32>
    %196 = arith.addf %194, %195 : vector<4x32xf32>
    %c0_63 = arith.constant 0 : index
    %197 = arith.index_cast %164 : i32 to index
    %c0_64 = arith.constant 0 : index
    %c0_65 = arith.constant 0 : index
    %198 = vector.load %arg5[%c0_63, %197, %c0_64, %c0_65] : memref<1x8x4x32xf32, #tpu.memory_space<vmem>>, vector<1x1x4x32xf32>
    %199 = vector.shape_cast %198 : vector<1x1x4x32xf32> to vector<4x32xf32>
    %200 = vector.shape_cast %196 : vector<4x32xf32> to vector<1x1x4x32xf32>
    tpu.vector_store %arg5[%c0_63, %197, %c0_64, %c0_65], %200 {strides = array<i32>} : memref<1x8x4x32xf32, #tpu.memory_space<vmem>>, vector<1x1x4x32xf32>,
    %c5_i32 = arith.constant 5 : i32
    %c1_i32_66 = arith.constant 1 : i32
    %201 = arith.cmpi eq, %arg0, %c1_i32_66 : i32
    %c7_i32_67 = arith.constant 7 : i32
    %202 = arith.subi %c7_i32_67, %c5_i32 : i32
    %203 = arith.select %201, %202, %c5_i32 : i32
    %c0_68 = arith.constant 0 : index
    %204 = arith.index_cast %203 : i32 to index
    %c0_69 = arith.constant 0 : index
    %c0_70 = arith.constant 0 : index
    %205 = vector.load %arg1[%c0_68, %204, %c0_69, %c0_70] : memref<1x8x4x96xf32, #tpu.memory_space<vmem>>, vector<1x1x4x96xf32>
    %206 = vector.shape_cast %205 : vector<1x1x4x96xf32> to vector<4x96xf32>
    %cst_71 = arith.constant dense<0.000000e+00> : vector<4x96xf32>
    %207 = tpu.matmul %196, %1, %cst_71 {dimension_numbers = #tpu.dot_dimension_numbers<[1], [0], [0], [1], [0, 0, 1, 1], [], []>} : vector<4x32xf32>, vector<32x96xf32>, vector<4x96xf32> -> vector<4x96xf32>
    %208 = vector.extract_strided_slice %206 {offsets = [0, 0], sizes = [4, 32], strides = [1, 1]} : vector<4x96xf32> to vector<4x32xf32>
    %209 = vector.extract_strided_slice %207 {offsets = [0, 0], sizes = [4, 32], strides = [1, 1]} : vector<4x96xf32> to vector<4x32xf32>
    %210 = arith.addf %208, %209 : vector<4x32xf32>
    %211 = arith.negf %210 : vector<4x32xf32>
    %212 = math.exp %211 : vector<4x32xf32>
    %cst_72 = arith.constant 1.000000e+00 : f32
    %213 = vector.broadcast %cst_72 : f32 to vector<4x32xf32>
    %214 = arith.addf %213, %212 : vector<4x32xf32>
    %215 = arith.divf %213, %214 : vector<4x32xf32>
    %216 = vector.extract_strided_slice %206 {offsets = [0, 32], sizes = [4, 32], strides = [1, 1]} : vector<4x96xf32> to vector<4x32xf32>
    %217 = vector.extract_strided_slice %207 {offsets = [0, 32], sizes = [4, 32], strides = [1, 1]} : vector<4x96xf32> to vector<4x32xf32>
    %218 = arith.addf %216, %217 : vector<4x32xf32>
    %219 = arith.negf %218 : vector<4x32xf32>
    %220 = math.exp %219 : vector<4x32xf32>
    %cst_73 = arith.constant 1.000000e+00 : f32
    %221 = vector.broadcast %cst_73 : f32 to vector<4x32xf32>
    %222 = arith.addf %221, %220 : vector<4x32xf32>
    %223 = arith.divf %221, %222 : vector<4x32xf32>
    %224 = vector.extract_strided_slice %206 {offsets = [0, 64], sizes = [4, 32], strides = [1, 1]} : vector<4x96xf32> to vector<4x32xf32>
    %225 = vector.extract_strided_slice %207 {offsets = [0, 64], sizes = [4, 32], strides = [1, 1]} : vector<4x96xf32> to vector<4x32xf32>
    %226 = vector.broadcast %3 : vector<1x32xf32> to vector<4x32xf32>
    %227 = arith.addf %225, %226 : vector<4x32xf32>
    %228 = arith.mulf %215, %227 : vector<4x32xf32>
    %229 = arith.addf %224, %228 : vector<4x32xf32>
    %230 = math.tanh %229 : vector<4x32xf32>
    %cst_74 = arith.constant 1.000000e+00 : f32
    %231 = vector.broadcast %cst_74 : f32 to vector<4x32xf32>
    %232 = arith.subf %231, %223 : vector<4x32xf32>
    %233 = arith.mulf %232, %230 : vector<4x32xf32>
    %234 = arith.mulf %223, %196 : vector<4x32xf32>
    %235 = arith.addf %233, %234 : vector<4x32xf32>
    %c0_75 = arith.constant 0 : index
    %236 = arith.index_cast %203 : i32 to index
    %c0_76 = arith.constant 0 : index
    %c0_77 = arith.constant 0 : index
    %237 = vector.load %arg5[%c0_75, %236, %c0_76, %c0_77] : memref<1x8x4x32xf32, #tpu.memory_space<vmem>>, vector<1x1x4x32xf32>
    %238 = vector.shape_cast %237 : vector<1x1x4x32xf32> to vector<4x32xf32>
    %239 = vector.shape_cast %235 : vector<4x32xf32> to vector<1x1x4x32xf32>
    tpu.vector_store %arg5[%c0_75, %236, %c0_76, %c0_77], %239 {strides = array<i32>} : memref<1x8x4x32xf32, #tpu.memory_space<vmem>>, vector<1x1x4x32xf32>,
    %c6_i32 = arith.constant 6 : i32
    %c1_i32_78 = arith.constant 1 : i32
    %240 = arith.cmpi eq, %arg0, %c1_i32_78 : i32
    %c7_i32_79 = arith.constant 7 : i32
    %241 = arith.subi %c7_i32_79, %c6_i32 : i32
    %242 = arith.select %240, %241, %c6_i32 : i32
    %c0_80 = arith.constant 0 : index
    %243 = arith.index_cast %242 : i32 to index
    %c0_81 = arith.constant 0 : index
    %c0_82 = arith.constant 0 : index
    %244 = vector.load %arg1[%c0_80, %243, %c0_81, %c0_82] : memref<1x8x4x96xf32, #tpu.memory_space<vmem>>, vector<1x1x4x96xf32>
    %245 = vector.shape_cast %244 : vector<1x1x4x96xf32> to vector<4x96xf32>
    %cst_83 = arith.constant dense<0.000000e+00> : vector<4x96xf32>
    %246 = tpu.matmul %235, %1, %cst_83 {dimension_numbers = #tpu.dot_dimension_numbers<[1], [0], [0], [1], [0, 0, 1, 1], [], []>} : vector<4x32xf32>, vector<32x96xf32>, vector<4x96xf32> -> vector<4x96xf32>
    %247 = vector.extract_strided_slice %245 {offsets = [0, 0], sizes = [4, 32], strides = [1, 1]} : vector<4x96xf32> to vector<4x32xf32>
    %248 = vector.extract_strided_slice %246 {offsets = [0, 0], sizes = [4, 32], strides = [1, 1]} : vector<4x96xf32> to vector<4x32xf32>
    %249 = arith.addf %247, %248 : vector<4x32xf32>
    %250 = arith.negf %249 : vector<4x32xf32>
    %251 = math.exp %250 : vector<4x32xf32>
    %cst_84 = arith.constant 1.000000e+00 : f32
    %252 = vector.broadcast %cst_84 : f32 to vector<4x32xf32>
    %253 = arith.addf %252, %251 : vector<4x32xf32>
    %254 = arith.divf %252, %253 : vector<4x32xf32>
    %255 = vector.extract_strided_slice %245 {offsets = [0, 32], sizes = [4, 32], strides = [1, 1]} : vector<4x96xf32> to vector<4x32xf32>
    %256 = vector.extract_strided_slice %246 {offsets = [0, 32], sizes = [4, 32], strides = [1, 1]} : vector<4x96xf32> to vector<4x32xf32>
    %257 = arith.addf %255, %256 : vector<4x32xf32>
    %258 = arith.negf %257 : vector<4x32xf32>
    %259 = math.exp %258 : vector<4x32xf32>
    %cst_85 = arith.constant 1.000000e+00 : f32
    %260 = vector.broadcast %cst_85 : f32 to vector<4x32xf32>
    %261 = arith.addf %260, %259 : vector<4x32xf32>
    %262 = arith.divf %260, %261 : vector<4x32xf32>
    %263 = vector.extract_strided_slice %245 {offsets = [0, 64], sizes = [4, 32], strides = [1, 1]} : vector<4x96xf32> to vector<4x32xf32>
    %264 = vector.extract_strided_slice %246 {offsets = [0, 64], sizes = [4, 32], strides = [1, 1]} : vector<4x96xf32> to vector<4x32xf32>
    %265 = vector.broadcast %3 : vector<1x32xf32> to vector<4x32xf32>
    %266 = arith.addf %264, %265 : vector<4x32xf32>
    %267 = arith.mulf %254, %266 : vector<4x32xf32>
    %268 = arith.addf %263, %267 : vector<4x32xf32>
    %269 = math.tanh %268 : vector<4x32xf32>
    %cst_86 = arith.constant 1.000000e+00 : f32
    %270 = vector.broadcast %cst_86 : f32 to vector<4x32xf32>
    %271 = arith.subf %270, %262 : vector<4x32xf32>
    %272 = arith.mulf %271, %269 : vector<4x32xf32>
    %273 = arith.mulf %262, %235 : vector<4x32xf32>
    %274 = arith.addf %272, %273 : vector<4x32xf32>
    %c0_87 = arith.constant 0 : index
    %275 = arith.index_cast %242 : i32 to index
    %c0_88 = arith.constant 0 : index
    %c0_89 = arith.constant 0 : index
    %276 = vector.load %arg5[%c0_87, %275, %c0_88, %c0_89] : memref<1x8x4x32xf32, #tpu.memory_space<vmem>>, vector<1x1x4x32xf32>
    %277 = vector.shape_cast %276 : vector<1x1x4x32xf32> to vector<4x32xf32>
    %278 = vector.shape_cast %274 : vector<4x32xf32> to vector<1x1x4x32xf32>
    tpu.vector_store %arg5[%c0_87, %275, %c0_88, %c0_89], %278 {strides = array<i32>} : memref<1x8x4x32xf32, #tpu.memory_space<vmem>>, vector<1x1x4x32xf32>,
    %c7_i32_90 = arith.constant 7 : i32
    %c1_i32_91 = arith.constant 1 : i32
    %279 = arith.cmpi eq, %arg0, %c1_i32_91 : i32
    %c7_i32_92 = arith.constant 7 : i32
    %280 = arith.subi %c7_i32_92, %c7_i32_90 : i32
    %281 = arith.select %279, %280, %c7_i32_90 : i32
    %c0_93 = arith.constant 0 : index
    %282 = arith.index_cast %281 : i32 to index
    %c0_94 = arith.constant 0 : index
    %c0_95 = arith.constant 0 : index
    %283 = vector.load %arg1[%c0_93, %282, %c0_94, %c0_95] : memref<1x8x4x96xf32, #tpu.memory_space<vmem>>, vector<1x1x4x96xf32>
    %284 = vector.shape_cast %283 : vector<1x1x4x96xf32> to vector<4x96xf32>
    %cst_96 = arith.constant dense<0.000000e+00> : vector<4x96xf32>
    %285 = tpu.matmul %274, %1, %cst_96 {dimension_numbers = #tpu.dot_dimension_numbers<[1], [0], [0], [1], [0, 0, 1, 1], [], []>} : vector<4x32xf32>, vector<32x96xf32>, vector<4x96xf32> -> vector<4x96xf32>
    %286 = vector.extract_strided_slice %284 {offsets = [0, 0], sizes = [4, 32], strides = [1, 1]} : vector<4x96xf32> to vector<4x32xf32>
    %287 = vector.extract_strided_slice %285 {offsets = [0, 0], sizes = [4, 32], strides = [1, 1]} : vector<4x96xf32> to vector<4x32xf32>
    %288 = arith.addf %286, %287 : vector<4x32xf32>
    %289 = arith.negf %288 : vector<4x32xf32>
    %290 = math.exp %289 : vector<4x32xf32>
    %cst_97 = arith.constant 1.000000e+00 : f32
    %291 = vector.broadcast %cst_97 : f32 to vector<4x32xf32>
    %292 = arith.addf %291, %290 : vector<4x32xf32>
    %293 = arith.divf %291, %292 : vector<4x32xf32>
    %294 = vector.extract_strided_slice %284 {offsets = [0, 32], sizes = [4, 32], strides = [1, 1]} : vector<4x96xf32> to vector<4x32xf32>
    %295 = vector.extract_strided_slice %285 {offsets = [0, 32], sizes = [4, 32], strides = [1, 1]} : vector<4x96xf32> to vector<4x32xf32>
    %296 = arith.addf %294, %295 : vector<4x32xf32>
    %297 = arith.negf %296 : vector<4x32xf32>
    %298 = math.exp %297 : vector<4x32xf32>
    %cst_98 = arith.constant 1.000000e+00 : f32
    %299 = vector.broadcast %cst_98 : f32 to vector<4x32xf32>
    %300 = arith.addf %299, %298 : vector<4x32xf32>
    %301 = arith.divf %299, %300 : vector<4x32xf32>
    %302 = vector.extract_strided_slice %284 {offsets = [0, 64], sizes = [4, 32], strides = [1, 1]} : vector<4x96xf32> to vector<4x32xf32>
    %303 = vector.extract_strided_slice %285 {offsets = [0, 64], sizes = [4, 32], strides = [1, 1]} : vector<4x96xf32> to vector<4x32xf32>
    %304 = vector.broadcast %3 : vector<1x32xf32> to vector<4x32xf32>
    %305 = arith.addf %303, %304 : vector<4x32xf32>
    %306 = arith.mulf %293, %305 : vector<4x32xf32>
    %307 = arith.addf %302, %306 : vector<4x32xf32>
    %308 = math.tanh %307 : vector<4x32xf32>
    %cst_99 = arith.constant 1.000000e+00 : f32
    %309 = vector.broadcast %cst_99 : f32 to vector<4x32xf32>
    %310 = arith.subf %309, %301 : vector<4x32xf32>
    %311 = arith.mulf %310, %308 : vector<4x32xf32>
    %312 = arith.mulf %301, %274 : vector<4x32xf32>
    %313 = arith.addf %311, %312 : vector<4x32xf32>
    %c0_100 = arith.constant 0 : index
    %314 = arith.index_cast %281 : i32 to index
    %c0_101 = arith.constant 0 : index
    %c0_102 = arith.constant 0 : index
    %315 = vector.load %arg5[%c0_100, %314, %c0_101, %c0_102] : memref<1x8x4x32xf32, #tpu.memory_space<vmem>>, vector<1x1x4x32xf32>
    %316 = vector.shape_cast %315 : vector<1x1x4x32xf32> to vector<4x32xf32>
    %317 = vector.shape_cast %313 : vector<4x32xf32> to vector<1x1x4x32xf32>
    tpu.vector_store %arg5[%c0_100, %314, %c0_101, %c0_102], %317 {strides = array<i32>} : memref<1x8x4x32xf32, #tpu.memory_space<vmem>>, vector<1x1x4x32xf32>,
    %c8_i32 = arith.constant 8 : i32
    %c0_103 = arith.constant 0 : index
    %c0_104 = arith.constant 0 : index
    %c0_105 = arith.constant 0 : index
    %318 = vector.load %arg6[%c0_103, %c0_104, %c0_105] : memref<1x4x32xf32, #tpu.memory_space<vmem>>, vector<1x4x32xf32>
    %319 = vector.shape_cast %318 : vector<1x4x32xf32> to vector<4x32xf32>
    %320 = vector.shape_cast %313 : vector<4x32xf32> to vector<1x4x32xf32>
    tpu.vector_store %arg6[%c0_103, %c0_104, %c0_105], %320 {strides = array<i32>} : memref<1x4x32xf32, #tpu.memory_space<vmem>>, vector<1x4x32xf32>,
    return
  }
  func.func @transform_0(%arg0: i32) -> (i32, i32, i32, i32) {
    %c0_i32 = arith.constant 0 : i32
    %c0_i32_0 = arith.constant 0 : i32
    %c0_i32_1 = arith.constant 0 : i32
    %c0_i32_2 = arith.constant 0 : i32
    return %arg0, %c0_i32, %c0_i32_0, %c0_i32_1 : i32, i32, i32, i32
  }
  func.func @transform_1(%arg0: i32) -> (i32, i32, i32) {
    %c0_i32 = arith.constant 0 : i32
    %c0_i32_0 = arith.constant 0 : i32
    %c0_i32_1 = arith.constant 0 : i32
    return %arg0, %c0_i32, %c0_i32_0 : i32, i32, i32
  }
  func.func @transform_2(%arg0: i32) -> (i32, i32, i32) {
    %c0_i32 = arith.constant 0 : i32
    %c0_i32_0 = arith.constant 0 : i32
    %c0_i32_1 = arith.constant 0 : i32
    return %arg0, %c0_i32, %c0_i32_0 : i32, i32, i32
  }
  func.func @transform_3(%arg0: i32) -> (i32, i32, i32) {
    %c0_i32 = arith.constant 0 : i32
    %c0_i32_0 = arith.constant 0 : i32
    %c0_i32_1 = arith.constant 0 : i32
    return %arg0, %c0_i32, %c0_i32_0 : i32, i32, i32
  }
  func.func @transform_4(%arg0: i32) -> (i32, i32, i32, i32) {
    %c0_i32 = arith.constant 0 : i32
    %c0_i32_0 = arith.constant 0 : i32
    %c0_i32_1 = arith.constant 0 : i32
    %c0_i32_2 = arith.constant 0 : i32
    return %arg0, %c0_i32, %c0_i32_0, %c0_i32_1 : i32, i32, i32, i32
  }
  func.func @transform_5(%arg0: i32) -> (i32, i32, i32) {
    %c0_i32 = arith.constant 0 : i32
    %c0_i32_0 = arith.constant 0 : i32
    %c0_i32_1 = arith.constant 0 : i32
    return %arg0, %c0_i32, %c0_i32_0 : i32, i32, i32
  }
}

</mosaic_0001>

<llo_original>
// kernel: tpu_custom_call.1
$region0: #{tpu_custom_call.1}
  #allocation0 [shape = 'u32[]', space=smem, size = 0x4, offset = 0x4, fixed_abs, tag = 'smem constant byte address 0x4 - core index']
  #allocation1 [shape = 'u32[144,128]{1,0:T(1,128)}', space=vmem, size = 0x12000, scoped, tag = 'internal scratch']
  %s0 = inlined_call_operand.hbm [shape: f32[2,8,4,96], index: 0, kind: input, shape index: {}]
  %s1 = inlined_call_operand.hbm [shape: f32[2,4,32], index: 1, kind: input, shape index: {}]
  %s2 = inlined_call_operand.hbm [shape: f32[2,32,96], index: 2, kind: input, shape index: {}]
  %s3 = inlined_call_operand.vmem [shape: f32[2,1,32], index: 3, kind: input, shape index: {}]
  %s4 = inlined_call_operand.hbm [shape: f32[2,8,4,32], index: 4, kind: output, shape index: {0}]
  %s5 = inlined_call_operand.hbm [shape: f32[2,4,32], index: 5, kind: output, shape index: {1}]
  %6 = xla_tuple %s4, %s5
  %s7 = sld [smem:[#allocation0]]
  $region69: #{tpu_custom_call.1} parent=0
    _
  %s9 = ssub.s32 1, %s7
  %s10 = scalar_select 0, %s9, %s7
  $region1: #{tpu_custom_call.1} parent=0
    #allocation2 [shape = 'u8[32768]{0}', space=vmem, size = 0x8000, scoped, tag = 'input window, operand 0']
    #allocation3 [shape = 's32[2]{0}', space=sflag, size = 0x8, scoped, tag = 'scoped memory for tpu_custom_call.1']
    #allocation4 [shape = 's32[2]{0}', space=sflag, size = 0x8, scoped, tag = 'scoped memory for tpu_custom_call.1']
    #allocation5 [shape = 'u8[4096]{0}', space=vmem, size = 0x1000, scoped, tag = 'input window, operand 1']
    #allocation6 [shape = 's32[2]{0}', space=sflag, size = 0x8, scoped, tag = 'scoped memory for tpu_custom_call.1']
    #allocation7 [shape = 'u8[32768]{0}', space=vmem, size = 0x8000, scoped, tag = 'input window, operand 2']
    #allocation8 [shape = 'u8[32768]{0}', space=vmem, size = 0x8000, scoped, tag = 'output window, operand 0']
    #allocation9 [shape = 'u8[4096]{0}', space=vmem, size = 0x1000, scoped, tag = 'output window, operand 1']
    #allocation10 [shape = 's32[2]{0}', space=sflag, size = 0x8, scoped, tag = 'scoped memory for tpu_custom_call.1']
    %11 = vsyncpa [#allocation3], 0
    %s12 = scalar_lea.sflag [#allocation3], 1
    %13 = vsyncpa %s12, 0
    %14 = vsyncpa [#allocation6], 0
    %s15 = scalar_lea.sflag [#allocation6], 1
    %16 = vsyncpa %s15, 0
    %17 = vsyncpa [#allocation4], 0
    %s18 = scalar_lea.sflag [#allocation4], 1
    %19 = vsyncpa %s18, 0
    %20 = vsyncpa [#allocation10], 0
    %s21 = scalar_lea.sflag [#allocation10], 1
    %22 = vsyncpa %s21, 0
    loop: start=0, step=1, limit=4
    $region2: #{tpu_custom_call.1} parent=1 // loop_pre_header
      _
    $region3: #{tpu_custom_call.1} parent=1 // loop_header
      %s24 = sphi 0, %s28
      %p25 = scmp.ge.s32.totalorder %s24, 4
      %s34 = sphi 0, %s36
      %s37 = sphi 0, %s34
      %s38 = sphi 0, %s37
      %s54 = sphi 0, %s38
      %s60 = sphi 0, %s62
      %s63 = sphi 0, %s60
      %s64 = sphi 0, %s63
      %s80 = sphi 0, %s64
      %s86 = sphi 0, %s88
      %s89 = sphi 0, %s86
      %s90 = sphi 0, %s89
      %s106 = sphi 0, %s90
      %s112 = sphi 0, %s114
      %s115 = sphi 0, %s112
      %s116 = sphi 0, %s115
      %s132 = sphi 0, %s116
      %s138 = sphi 0, %s140
      %s141 = sphi 0, %s138
      %s142 = sphi 0, %s141
      %s158 = sphi 0, %s142
      %s164 = sphi 0, %s166
      %s167 = sphi 0, %s164
      %s168 = sphi 0, %s167
      %s184 = sphi 0, %s168
    $region4: #{tpu_custom_call.1} parent=1 // loop_header_branch
      %27 = sbr.rel (%p25) target = $region8
    $region5: #{tpu_custom_call.1} parent=1 // loop_body
      %s29 = ssub.s32 %s24, 1
      %s30 = ssub.s32 %s24, 2
      %s31 = sadd.s32 %s24, 1
      %s32 = ssub.s32 %s24, %s31
      %p33 = scmp.eq.s32.totalorder %s32, 0
      %s35 = sadd.s32 %s34, 1
      %s36 = scalar_select %p33, %s34, %s35
      %p39 = pneg %p33
      %p40 = scmp.eq.s32.totalorder %s24, 1
      %p41 = por %p39, %p40
      %p42 = scmp.ne.s32.totalorder %s34, %s37
      %p43 = scmp.eq.s32.totalorder %s24, 0
      %p44 = por %p42, %p43
      %p45 = scmp.ne.s32.totalorder %s34, %s37
      %p46 = scmp.eq.s32.totalorder %s29, 1
      %p47 = por %p45, %p46
      %p48 = scmp.ne.s32.totalorder %s37, %s38
      %p49 = scmp.eq.s32.totalorder %s29, 0
      %p50 = por %p48, %p49
      %p51 = scmp.ne.s32.totalorder %s37, %s38
      %p52 = scmp.eq.s32.totalorder %s30, 1
      %p53 = por %p51, %p52
      %p55 = scmp.ne.s32.totalorder %s38, %s54
      %p56 = scmp.eq.s32.totalorder %s30, 0
      %p57 = por %p55, %p56
      %s58 = ssub.s32 %s24, %s31
      %p59 = scmp.eq.s32.totalorder %s58, 0
      %s61 = sadd.s32 %s60, 1
      %s62 = scalar_select %p59, %s60, %s61
      %p65 = pneg %p59
      %p66 = scmp.eq.s32.totalorder %s24, 1
      %p67 = por %p65, %p66
      %p68 = scmp.ne.s32.totalorder %s60, %s63
      %p69 = scmp.eq.s32.totalorder %s24, 0
      %p70 = por %p68, %p69
      %p71 = scmp.ne.s32.totalorder %s60, %s63
      %p72 = scmp.eq.s32.totalorder %s29, 1
      %p73 = por %p71, %p72
      %p74 = scmp.ne.s32.totalorder %s63, %s64
      %p75 = scmp.eq.s32.totalorder %s29, 0
      %p76 = por %p74, %p75
      %p77 = scmp.ne.s32.totalorder %s63, %s64
      %p78 = scmp.eq.s32.totalorder %s30, 1
      %p79 = por %p77, %p78
      %p81 = scmp.ne.s32.totalorder %s64, %s80
      %p82 = scmp.eq.s32.totalorder %s30, 0
      %p83 = por %p81, %p82
      %s84 = ssub.s32 %s24, %s31
      %p85 = scmp.eq.s32.totalorder %s84, 0
      %s87 = sadd.s32 %s86, 1
      %s88 = scalar_select %p85, %s86, %s87
      %p91 = pneg %p85
      %p92 = scmp.eq.s32.totalorder %s24, 1
      %p93 = por %p91, %p92
      %p94 = scmp.ne.s32.totalorder %s86, %s89
      %p95 = scmp.eq.s32.totalorder %s24, 0
      %p96 = por %p94, %p95
      %p97 = scmp.ne.s32.totalorder %s86, %s89
      %p98 = scmp.eq.s32.totalorder %s29, 1
      %p99 = por %p97, %p98
      %p100 = scmp.ne.s32.totalorder %s89, %s90
      %p101 = scmp.eq.s32.totalorder %s29, 0
      %p102 = por %p100, %p101
      %p103 = scmp.ne.s32.totalorder %s89, %s90
      %p104 = scmp.eq.s32.totalorder %s30, 1
      %p105 = por %p103, %p104
      %p107 = scmp.ne.s32.totalorder %s90, %s106
      %p108 = scmp.eq.s32.totalorder %s30, 0
      %p109 = por %p107, %p108
      %s110 = ssub.s32 %s24, %s31
      %p111 = scmp.eq.s32.totalorder %s110, 0
      %s113 = sadd.s32 %s112, 1
      %s114 = scalar_select %p111, %s112, %s113
      %p117 = pneg %p111
      %p118 = scmp.eq.s32.totalorder %s24, 1
      %p119 = por %p117, %p118
      %p120 = scmp.ne.s32.totalorder %s112, %s115
      %p121 = scmp.eq.s32.totalorder %s24, 0
      %p122 = por %p120, %p121
      %p123 = scmp.ne.s32.totalorder %s112, %s115
      %p124 = scmp.eq.s32.totalorder %s29, 1
      %p125 = por %p123, %p124
      %p126 = scmp.ne.s32.totalorder %s115, %s116
      %p127 = scmp.eq.s32.totalorder %s29, 0
      %p128 = por %p126, %p127
      %p129 = scmp.ne.s32.totalorder %s115, %s116
      %p130 = scmp.eq.s32.totalorder %s30, 1
      %p131 = por %p129, %p130
      %p133 = scmp.ne.s32.totalorder %s116, %s132
      %p134 = scmp.eq.s32.totalorder %s30, 0
      %p135 = por %p133, %p134
      %s136 = ssub.s32 %s24, %s31
      %p137 = scmp.eq.s32.totalorder %s136, 0
      %s139 = sadd.s32 %s138, 1
      %s140 = scalar_select %p137, %s138, %s139
      %p143 = pneg %p137
      %p144 = scmp.eq.s32.totalorder %s24, 1
      %p145 = por %p143, %p144
      %p146 = scmp.ne.s32.totalorder %s138, %s141
      %p147 = scmp.eq.s32.totalorder %s24, 0
      %p148 = por %p146, %p147
      %p149 = scmp.ne.s32.totalorder %s138, %s141
      %p150 = scmp.eq.s32.totalorder %s29, 1
      %p151 = por %p149, %p150
      %p152 = scmp.ne.s32.totalorder %s141, %s142
      %p153 = scmp.eq.s32.totalorder %s29, 0
      %p154 = por %p152, %p153
      %p155 = scmp.ne.s32.totalorder %s141, %s142
      %p156 = scmp.eq.s32.totalorder %s30, 1
      %p157 = por %p155, %p156
      %p159 = scmp.ne.s32.totalorder %s142, %s158
      %p160 = scmp.eq.s32.totalorder %s30, 0
      %p161 = por %p159, %p160
      %s162 = ssub.s32 %s24, %s31
      %p163 = scmp.eq.s32.totalorder %s162, 0
      %s165 = sadd.s32 %s164, 1
      %s166 = scalar_select %p163, %s164, %s165
      %p169 = pneg %p163
      %p170 = scmp.eq.s32.totalorder %s24, 1
      %p171 = por %p169, %p170
      %p172 = scmp.ne.s32.totalorder %s164, %s167
      %p173 = scmp.eq.s32.totalorder %s24, 0
      %p174 = por %p172, %p173
      %p175 = scmp.ne.s32.totalorder %s164, %s167
      %p176 = scmp.eq.s32.totalorder %s29, 1
      %p177 = por %p175, %p176
      %p178 = scmp.ne.s32.totalorder %s167, %s168
      %p179 = scmp.eq.s32.totalorder %s29, 0
      %p180 = por %p178, %p179
      %p181 = scmp.ne.s32.totalorder %s167, %s168
      %p182 = scmp.eq.s32.totalorder %s30, 1
      %p183 = por %p181, %p182
      %p185 = scmp.ne.s32.totalorder %s168, %s184
      %p186 = scmp.eq.s32.totalorder %s30, 0
      %p187 = por %p185, %p186
      %p188 = scmp.le.s32.totalorder 1, %s24
      %p189 = scmp.lt.s32.totalorder %s24, 3
      %p190 = pnand %p188, %p189
      %p191 = pneg %p190
      // Predicated region
      $region9: #{tpu_custom_call.1} parent=5 // pred_check
        _
      $region10: #{tpu_custom_call.1} parent=5 // pred_check_branch
        %193 = sbr.rel (%p190) target = $region12
      $region11: #{tpu_custom_call.1} parent=5 // pred_region
        %s194 = ssub.s32 %s24, 1
      $region12: #{tpu_custom_call.1} parent=5 // pred_fallthru
        _
      %p195 = scmp.lt.s32.totalorder %s24, 2
      // Predicated region
      $region13: #{tpu_custom_call.1} parent=5 // pred_check
        %p196 = pneg %p195
      $region14: #{tpu_custom_call.1} parent=5 // pred_check_branch
        %198 = sbr.rel (%p196) target = $region16
      $region15: #{tpu_custom_call.1} parent=5 // pred_region
        // Predicated region
        $region17: #{tpu_custom_call.1} parent=15 // pred_check
          %p199 = pneg %p44
        $region18: #{tpu_custom_call.1} parent=15 // pred_check_branch
          %201 = sbr.rel (%p199) target = $region20
        $region19: #{tpu_custom_call.1} parent=15 // pred_region
          %s202 = sand.u32 %s34, 1
          %s203 = scalar_lea.sflag [#allocation3], %s202
          %s204 = sand.u32 %s34, 1
          %s205 = smul.addr %s204, 32
          %s206 = scalar_lea.vmem [#allocation2], %s205
          %s208 = ssub.s32 512, 512
          %209 = vsyncadd %s203, %s208
          %s210 = smul.addr %s24, 8
          %s211 = smul.addr %s210, 64
          %s212 = scalar_lea.hbm %s0, %s211
          %s213 = sshll.u32 %s206, 4
          %s214 = int_to_ptr.vmem [resolvable:$true] %s213
          %219 = dma.hbm_to_vmem [thread:$0]  %s212, 512, %s214, %s203, 64, 64, 4
        $region20: #{tpu_custom_call.1} parent=15 // pred_fallthru
          _
        // Predicated region
        $region21: #{tpu_custom_call.1} parent=15 // pred_check
          %p220 = pneg %p70
        $region22: #{tpu_custom_call.1} parent=15 // pred_check_branch
          %222 = sbr.rel (%p220) target = $region24
        $region23: #{tpu_custom_call.1} parent=15 // pred_region
          %s223 = sand.u32 %s24, 1
          %s224 = scalar_lea.sflag [#allocation6], %s223
          %s225 = sand.u32 %s60, 1
          %s226 = smul.addr %s225, 4
          %s227 = scalar_lea.vmem [#allocation5], %s226
          %s229 = ssub.s32 64, 64
          %230 = vsyncadd %s224, %s229
          %s231 = smul.addr %s24, 64
          %s232 = scalar_lea.hbm %s1, %s231
          %s234 = sshll.u32 %s227, 4
          %s235 = int_to_ptr.vmem [resolvable:$true] %s234
          %237 = dma.hbm_to_vmem [thread:$0]  %s232, 64, %s235, %s224
        $region24: #{tpu_custom_call.1} parent=15 // pred_fallthru
          _
        // Predicated region
        $region25: #{tpu_custom_call.1} parent=15 // pred_check
          %p238 = pneg %p96
        $region26: #{tpu_custom_call.1} parent=15 // pred_check_branch
          %240 = sbr.rel (%p238) target = $region28
        $region27: #{tpu_custom_call.1} parent=15 // pred_region
          %s241 = sand.u32 %s24, 1
          %s242 = scalar_lea.sflag [#allocation6], %s241
          %s243 = sand.u32 %s86, 1
          %s244 = smul.addr %s243, 32
          %s245 = scalar_lea.vmem [#allocation7], %s244
          %s247 = ssub.s32 512, 512
          %248 = vsyncadd %s242, %s247
          %s249 = smul.addr %s24, 4
          %s250 = smul.addr %s249, 128
          %s251 = scalar_lea.hbm %s2, %s250
          %s252 = sshll.u32 %s245, 4
          %s253 = int_to_ptr.vmem [resolvable:$true] %s252
          %258 = dma.hbm_to_vmem [thread:$0]  %s251, 512, %s253, %s242, 128, 128, 8
        $region28: #{tpu_custom_call.1} parent=15 // pred_fallthru
          _
        // Predicated region
        $region29: #{tpu_custom_call.1} parent=15 // pred_check
          %p259 = pneg %p122
        $region30: #{tpu_custom_call.1} parent=15 // pred_check_branch
          %261 = sbr.rel (%p259) target = $region32
        $region31: #{tpu_custom_call.1} parent=15 // pred_region
          %p262 = scmp.lt.s32.totalorder %s24, 1
          %s263 = scalar_select %p262, %s24, 1
          %s264 = scalar_lea.vmem %s3, %s263
        $region32: #{tpu_custom_call.1} parent=15 // pred_fallthru
          _
      $region16: #{tpu_custom_call.1} parent=5 // pred_fallthru
        _
      %p265 = scmp.le.s32.totalorder 1, %s24
      %p266 = scmp.lt.s32.totalorder %s24, 3
      %p267 = pnand %p265, %p266
      %p268 = pneg %p267
      // Predicated region
      $region33: #{tpu_custom_call.1} parent=5 // pred_check
        _
      $region34: #{tpu_custom_call.1} parent=5 // pred_check_branch
        %270 = sbr.rel (%p267) target = $region36
      $region35: #{tpu_custom_call.1} parent=5 // pred_region
        %s271 = ssub.s32 %s24, 1
        %s272 = sand.u32 %s37, 1
        %s273 = scalar_lea.sflag [#allocation3], %s272
        %s274 = sand.u32 %s37, 1
        %s275 = smul.addr %s274, 32
        %s276 = scalar_lea.vmem [#allocation2], %s275
        // Predicated region
        $region37: #{tpu_custom_call.1} parent=35 // pred_check
          %p277 = pneg %p50
        $region38: #{tpu_custom_call.1} parent=35 // pred_check_branch
          %279 = sbr.rel (%p277) target = $region40
        $region39: #{tpu_custom_call.1} parent=35 // pred_region
          %280 = dma.done %s273, 512
        $region40: #{tpu_custom_call.1} parent=35 // pred_fallthru
          _
        %s281 = sand.u32 %s29, 1
        %s282 = scalar_lea.sflag [#allocation6], %s281
        %s283 = sand.u32 %s63, 1
        %s284 = smul.addr %s283, 4
        %s285 = scalar_lea.vmem [#allocation5], %s284
        // Predicated region
        $region41: #{tpu_custom_call.1} parent=35 // pred_check
          %p286 = pneg %p76
        $region42: #{tpu_custom_call.1} parent=35 // pred_check_branch
          %288 = sbr.rel (%p286) target = $region44
        $region43: #{tpu_custom_call.1} parent=35 // pred_region
          %289 = dma.done %s282, 64
        $region44: #{tpu_custom_call.1} parent=35 // pred_fallthru
          _
        %s290 = sand.u32 %s29, 1
        %s291 = scalar_lea.sflag [#allocation6], %s290
        %s292 = sand.u32 %s89, 1
        %s293 = smul.addr %s292, 32
        %s294 = scalar_lea.vmem [#allocation7], %s293
        // Predicated region
        $region45: #{tpu_custom_call.1} parent=35 // pred_check
          %p295 = pneg %p102
        $region46: #{tpu_custom_call.1} parent=35 // pred_check_branch
          %297 = sbr.rel (%p295) target = $region48
        $region47: #{tpu_custom_call.1} parent=35 // pred_region
          %298 = dma.done %s291, 512
        $region48: #{tpu_custom_call.1} parent=35 // pred_fallthru
          _
        %s299 = sand.u32 %s37, 1
        %s300 = scalar_lea.sflag [#allocation3], %s299
        %s301 = sand.u32 %s37, 1
        %s302 = smul.addr %s301, 32
        %s303 = scalar_lea.vmem [#allocation2], %s302
        %p304 = pneg %p50
        %p305 = pneg %p47
        %s306 = sand.u32 %s29, 1
        %s307 = scalar_lea.sflag [#allocation6], %s306
        %s308 = sand.u32 %s63, 1
        %s309 = smul.addr %s308, 4
        %s310 = scalar_lea.vmem [#allocation5], %s309
        %p311 = pneg %p76
        %p312 = pneg %p73
        %s313 = sand.u32 %s29, 1
        %s314 = scalar_lea.sflag [#allocation6], %s313
        %s315 = sand.u32 %s89, 1
        %s316 = smul.addr %s315, 32
        %s317 = scalar_lea.vmem [#allocation7], %s316
        %p318 = pneg %p102
        %p319 = pneg %p99
        %p320 = scmp.lt.s32.totalorder %s29, 1
        %s321 = scalar_select %p320, %s29, 1
        %s322 = scalar_lea.vmem %s3, %s321
        %p323 = pneg %p128
        %p324 = pneg %p125
        %p325 = pneg %p154
        %p326 = pneg %p151
        %s327 = sand.u32 %s141, 1
        %s328 = scalar_lea.sflag [#allocation4], %s327
        %s329 = sand.u32 %s141, 1
        %s330 = smul.addr %s329, 32
        %s331 = scalar_lea.vmem [#allocation8], %s330
        %p332 = pneg %p180
        %p333 = pneg %p177
        %s334 = sand.u32 %s167, 1
        %s335 = scalar_lea.sflag [#allocation10], %s334
        %s336 = sand.u32 %s167, 1
        %s337 = smul.addr %s336, 4
        %s338 = scalar_lea.vmem [#allocation9], %s337
        %p339 = scmp.lt.s32.totalorder %s29, 1
        %s340 = scalar_select %p339, %s29, 1
        %s341 = scalar_lea.vmem %s3, %s340
        %v342 = vld [vmem:[%s294] sm:$0xff]
        %v343 = vld [vmem:[%s294 + $0x8] sm:$0xff]
        %v344 = vld [vmem:[%s294 + $0x10] sm:$0xff]
        %v345 = vld [vmem:[%s294 + $0x18] sm:$0xff]
        %v346 = vld [vmem:[%s341] sm:$0x1]
        %v347 = vld [vmem:[%s285] sm:$0xf]
        %p348 = scmp.eq.s32.totalorder %s29, 1
        %s349 = scalar_select %p348, 7, 0
        %s350 = smul.u32 %s349, 4
        %s351 = scalar_lea.vmem %s276, %s350 [#allocation2]
        %v352 = vld [vmem:[%s351] sm:$0xf]
        %vm353 = vcmask 261120
        %v355 = vsel %vm353, %v347, 0
        %357 = vmatprep.subr.mxu0 0.0
        %358 = vmatpush1.msra.mxu0 %v342
        %359 = vmatprep.subr.mxu0 0.0
        %360 = vmatpush1.msra.mxu0 %v343
        %361 = vmatprep.subr.mxu0 0.0
        %362 = vmatpush1.msra.mxu0 %v344
        %363 = vmatprep.subr.mxu0 0.0
        %364 = vmatpush1.msra.mxu0 %v345
        %365 = vmatprep.subr.mxu0 0.0
        %366 = vmatpush1.msra.mxu0 0.0
        %367 = vmatprep.subr.mxu0 0.0
        %368 = vmatpush1.msra.mxu0 0.0
        %369 = vmatprep.subr.mxu0 0.0
        %370 = vmatpush1.msra.mxu0 0.0
        %371 = vmatprep.subr.mxu0 0.0
        %372 = vmatpush1.msra.mxu0 0.0
        %373 = vmatprep.subr.mxu0 0.0
        %374 = vmatpush1.msra.mxu0 0.0
        %375 = vmatprep.subr.mxu0 0.0
        %376 = vmatpush1.msra.mxu0 0.0
        %377 = vmatprep.subr.mxu0 0.0
        %378 = vmatpush1.msra.mxu0 0.0
        %379 = vmatprep.subr.mxu0 0.0
        %380 = vmatpush1.msra.mxu0 0.0
        %381 = vmatprep.subr.mxu0 0.0
        %382 = vmatpush1.msra.mxu0 0.0
        %383 = vmatprep.subr.mxu0 0.0
        %384 = vmatpush1.msra.mxu0 0.0
        %385 = vmatprep.subr.mxu0 0.0
        %386 = vmatpush1.msra.mxu0 0.0
        %387 = vmatprep.subr.mxu0 0.0
        %388 = vmatpush1.msra.mxu0 0.0
        %389 = vmatprep.subr.mxu0 0.0
        %390 = vmatpush1.msra.mxu0 0.0
        %391 = vmatprep.subr.mxu0 0.0
        %392 = vmatpush1.msra.mxu0 0.0
        %393 = vmatprep.subr.mxu0 0.0
        %394 = vmatpush1.msra.mxu0 0.0
        %395 = vmatprep.subr.mxu0 0.0
        %396 = vmatpush1.msra.mxu0 0.0
        %397 = vmatprep.subr.mxu0 0.0
        %398 = vmatpush1.msra.mxu0 0.0
        %399 = vmatprep.subr.mxu0 0.0
        %400 = vmatpush1.msra.mxu0 0.0
        %401 = vmatprep.subr.mxu0 0.0
        %402 = vmatpush1.msra.mxu0 0.0
        %403 = vmatprep.subr.mxu0 0.0
        %404 = vmatpush1.msra.mxu0 0.0
        %405 = vmatprep.subr.mxu0 0.0
        %406 = vmatpush1.msra.mxu0 0.0
        %407 = vmatprep.subr.mxu0 0.0
        %408 = vmatpush1.msra.mxu0 0.0
        %409 = vmatprep.subr.mxu0 0.0
        %410 = vmatpush1.msra.mxu0 0.0
        %411 = vmatprep.subr.mxu0 0.0
        %412 = vmatpush1.msra.mxu0 0.0
        %413 = vmatprep.subr.mxu0 0.0
        %414 = vmatpush1.msra.mxu0 0.0
        %415 = vmatprep.subr.mxu0 0.0
        %416 = vmatpush1.msra.mxu0 0.0
        %417 = vmatprep.subr.mxu0 0.0
        %418 = vmatpush1.msra.mxu0 0.0
        %419 = vmatprep.subr.mxu0 0.0
        %420 = vmatpush1.msra.mxu0 0.0
        %421 = vmatprep.mubr.f32.mxu0 0.0
        %422 = vmatmul.mubr.f32.gmra.mrb[0].mxu0 %v355
        %v423 = vpop.f32.mrb[0].mxu0
        %v424 = vadd.f32 0.0, %v423
        %v425 = vpop.f32.mrb[0].mxu0
        %426 = vdwg.mxu0
        %v427 = vadd.f32 %v352, %v424
        %v428 = vxor.u32 %v427, 2147483648
        %v429 = vmul.f32 %v428, 1.442695
        %v430 = vpow.pop %v429
        %v431 = vadd.f32 %v430, 1.0
        %v432 = vrcp.pop %v431
        %v433 = vmul.f32 1.0, %v432
        %v435 = vlaneseq
        %v436 = vshrl.u32 %v435, 7
        %v437 = vsub.s32 0, %v436
        %v438 = vrot.slane %v346, %v437
        %439 = vrot.lane.b32.xlu0 %v438, 64
        %v440 = vpop.permute.xlu0 %439
        %v442 = vadd.f32 %v424, %v440
        %444 = vrot.lane.b32.xlu0 %v442, 64
        %v445 = vpop.permute.xlu0 %444
        %v447 = vmul.f32 %v433, %v445
        %449 = vrot.lane.b32.xlu0 %v447, 64
        %v450 = vpop.permute.xlu0 %449
        %v452 = vadd.f32 %v352, %v450
        %v453 = vtanh.pop %v452
        %v454 = vsub.f32 1.0, %v433
        %456 = vrot.lane.b32.xlu0 %v453, 96
        %v457 = vpop.permute.xlu0 %456
        %v459 = vmul.f32 %v454, %v457
        %460 = vrot.lane.b32.xlu0 %v347, 32
        %v461 = vpop.permute.xlu0 %460
        %v463 = vmul.f32 %v433, %v461
        %v464 = vadd.f32 %v459, %v463
        %466 = vrot.lane.b32.xlu0 %v464, 96
        %v467 = vpop.permute.xlu0 %466
        %s469 = scalar_lea.vmem %s331, %s350 [#allocation8]
        %vm470 = vcmask 257024
        %471 = vst.msk [vmem:[%s469] sm:$0xf] %vm470, %v467
        %s472 = scalar_select %p348, 6, 1
        %s473 = smul.u32 %s472, 4
        %s474 = scalar_lea.vmem %s276, %s473 [#allocation2]
        %v475 = vld [vmem:[%s474] sm:$0xf]
        %v476 = vsel %vm353, %v467, 0
        %478 = vmatprep.subr.mxu0 0.0
        %479 = vmatpush1.msra.mxu0 %v342
        %480 = vmatprep.subr.mxu0 0.0
        %481 = vmatpush1.msra.mxu0 %v343
        %482 = vmatprep.subr.mxu0 0.0
        %483 = vmatpush1.msra.mxu0 %v344
        %484 = vmatprep.subr.mxu0 0.0
        %485 = vmatpush1.msra.mxu0 %v345
        %486 = vmatprep.subr.mxu0 0.0
        %487 = vmatpush1.msra.mxu0 0.0
        %488 = vmatprep.subr.mxu0 0.0
        %489 = vmatpush1.msra.mxu0 0.0
        %490 = vmatprep.subr.mxu0 0.0
        %491 = vmatpush1.msra.mxu0 0.0
        %492 = vmatprep.subr.mxu0 0.0
        %493 = vmatpush1.msra.mxu0 0.0
        %494 = vmatprep.subr.mxu0 0.0
        %495 = vmatpush1.msra.mxu0 0.0
        %496 = vmatprep.subr.mxu0 0.0
        %497 = vmatpush1.msra.mxu0 0.0
        %498 = vmatprep.subr.mxu0 0.0
        %499 = vmatpush1.msra.mxu0 0.0
        %500 = vmatprep.subr.mxu0 0.0
        %501 = vmatpush1.msra.mxu0 0.0
        %502 = vmatprep.subr.mxu0 0.0
        %503 = vmatpush1.msra.mxu0 0.0
        %504 = vmatprep.subr.mxu0 0.0
        %505 = vmatpush1.msra.mxu0 0.0
        %506 = vmatprep.subr.mxu0 0.0
        %507 = vmatpush1.msra.mxu0 0.0
        %508 = vmatprep.subr.mxu0 0.0
        %509 = vmatpush1.msra.mxu0 0.0
        %510 = vmatprep.subr.mxu0 0.0
        %511 = vmatpush1.msra.mxu0 0.0
        %512 = vmatprep.subr.mxu0 0.0
        %513 = vmatpush1.msra.mxu0 0.0
        %514 = vmatprep.subr.mxu0 0.0
        %515 = vmatpush1.msra.mxu0 0.0
        %516 = vmatprep.subr.mxu0 0.0
        %517 = vmatpush1.msra.mxu0 0.0
        %518 = vmatprep.subr.mxu0 0.0
        %519 = vmatpush1.msra.mxu0 0.0
        %520 = vmatprep.subr.mxu0 0.0
        %521 = vmatpush1.msra.mxu0 0.0
        %522 = vmatprep.subr.mxu0 0.0
        %523 = vmatpush1.msra.mxu0 0.0
        %524 = vmatprep.subr.mxu0 0.0
        %525 = vmatpush1.msra.mxu0 0.0
        %526 = vmatprep.subr.mxu0 0.0
        %527 = vmatpush1.msra.mxu0 0.0
        %528 = vmatprep.subr.mxu0 0.0
        %529 = vmatpush1.msra.mxu0 0.0
        %530 = vmatprep.subr.mxu0 0.0
        %531 = vmatpush1.msra.mxu0 0.0
        %532 = vmatprep.subr.mxu0 0.0
        %533 = vmatpush1.msra.mxu0 0.0
        %534 = vmatprep.subr.mxu0 0.0
        %535 = vmatpush1.msra.mxu0 0.0
        %536 = vmatprep.subr.mxu0 0.0
        %537 = vmatpush1.msra.mxu0 0.0
        %538 = vmatprep.subr.mxu0 0.0
        %539 = vmatpush1.msra.mxu0 0.0
        %540 = vmatprep.subr.mxu0 0.0
        %541 = vmatpush1.msra.mxu0 0.0
        %542 = vmatprep.mubr.f32.mxu0 0.0
        %543 = vmatmul.mubr.f32.gmra.mrb[0].mxu0 %v476
        %v544 = vpop.f32.mrb[0].mxu0
        %v545 = vadd.f32 0.0, %v544
        %v546 = vpop.f32.mrb[0].mxu0
        %547 = vdwg.mxu0
        %v548 = vadd.f32 %v475, %v545
        %v549 = vxor.u32 %v548, 2147483648
        %v550 = vmul.f32 %v549, 1.442695
        %v551 = vpow.pop %v550
        %v552 = vadd.f32 %v551, 1.0
        %v553 = vrcp.pop %v552
        %v554 = vmul.f32 1.0, %v553
        %v555 = vadd.f32 %v545, %v440
        %557 = vrot.lane.b32.xlu0 %v555, 64
        %v558 = vpop.permute.xlu0 %557
        %v560 = vmul.f32 %v554, %v558
        %562 = vrot.lane.b32.xlu0 %v560, 64
        %v563 = vpop.permute.xlu0 %562
        %v565 = vadd.f32 %v475, %v563
        %v566 = vtanh.pop %v565
        %v567 = vsub.f32 1.0, %v554
        %569 = vrot.lane.b32.xlu0 %v566, 96
        %v570 = vpop.permute.xlu0 %569
        %v572 = vmul.f32 %v567, %v570
        %v573 = vmul.f32 %v554, %v464
        %v574 = vadd.f32 %v572, %v573
        %576 = vrot.lane.b32.xlu0 %v574, 96
        %v577 = vpop.permute.xlu0 %576
        %s579 = scalar_lea.vmem %s331, %s473 [#allocation8]
        %580 = vst.msk [vmem:[%s579] sm:$0xf] %vm470, %v577
        %s581 = scalar_select %p348, 5, 2
        %s582 = smul.u32 %s581, 4
        %s583 = scalar_lea.vmem %s276, %s582 [#allocation2]
        %v584 = vld [vmem:[%s583] sm:$0xf]
        %v585 = vsel %vm353, %v577, 0
        %587 = vmatprep.subr.mxu0 0.0
        %588 = vmatpush1.msra.mxu0 %v342
        %589 = vmatprep.subr.mxu0 0.0
        %590 = vmatpush1.msra.mxu0 %v343
        %591 = vmatprep.subr.mxu0 0.0
        %592 = vmatpush1.msra.mxu0 %v344
        %593 = vmatprep.subr.mxu0 0.0
        %594 = vmatpush1.msra.mxu0 %v345
        %595 = vmatprep.subr.mxu0 0.0
        %596 = vmatpush1.msra.mxu0 0.0
        %597 = vmatprep.subr.mxu0 0.0
        %598 = vmatpush1.msra.mxu0 0.0
        %599 = vmatprep.subr.mxu0 0.0
        %600 = vmatpush1.msra.mxu0 0.0
        %601 = vmatprep.subr.mxu0 0.0
        %602 = vmatpush1.msra.mxu0 0.0
        %603 = vmatprep.subr.mxu0 0.0
        %604 = vmatpush1.msra.mxu0 0.0
        %605 = vmatprep.subr.mxu0 0.0
        %606 = vmatpush1.msra.mxu0 0.0
        %607 = vmatprep.subr.mxu0 0.0
        %608 = vmatpush1.msra.mxu0 0.0
        %609 = vmatprep.subr.mxu0 0.0
        %610 = vmatpush1.msra.mxu0 0.0
        %611 = vmatprep.subr.mxu0 0.0
        %612 = vmatpush1.msra.mxu0 0.0
        %613 = vmatprep.subr.mxu0 0.0
        %614 = vmatpush1.msra.mxu0 0.0
        %615 = vmatprep.subr.mxu0 0.0
        %616 = vmatpush1.msra.mxu0 0.0
        %617 = vmatprep.subr.mxu0 0.0
        %618 = vmatpush1.msra.mxu0 0.0
        %619 = vmatprep.subr.mxu0 0.0
        %620 = vmatpush1.msra.mxu0 0.0
        %621 = vmatprep.subr.mxu0 0.0
        %622 = vmatpush1.msra.mxu0 0.0
        %623 = vmatprep.subr.mxu0 0.0
        %624 = vmatpush1.msra.mxu0 0.0
        %625 = vmatprep.subr.mxu0 0.0
        %626 = vmatpush1.msra.mxu0 0.0
        %627 = vmatprep.subr.mxu0 0.0
        %628 = vmatpush1.msra.mxu0 0.0
        %629 = vmatprep.subr.mxu0 0.0
        %630 = vmatpush1.msra.mxu0 0.0
        %631 = vmatprep.subr.mxu0 0.0
        %632 = vmatpush1.msra.mxu0 0.0
        %633 = vmatprep.subr.mxu0 0.0
        %634 = vmatpush1.msra.mxu0 0.0
        %635 = vmatprep.subr.mxu0 0.0
        %636 = vmatpush1.msra.mxu0 0.0
        %637 = vmatprep.subr.mxu0 0.0
        %638 = vmatpush1.msra.mxu0 0.0
        %639 = vmatprep.subr.mxu0 0.0
        %640 = vmatpush1.msra.mxu0 0.0
        %641 = vmatprep.subr.mxu0 0.0
        %642 = vmatpush1.msra.mxu0 0.0
        %643 = vmatprep.subr.mxu0 0.0
        %644 = vmatpush1.msra.mxu0 0.0
        %645 = vmatprep.subr.mxu0 0.0
        %646 = vmatpush1.msra.mxu0 0.0
        %647 = vmatprep.subr.mxu0 0.0
        %648 = vmatpush1.msra.mxu0 0.0
        %649 = vmatprep.subr.mxu0 0.0
        %650 = vmatpush1.msra.mxu0 0.0
        %651 = vmatprep.mubr.f32.mxu0 0.0
        %652 = vmatmul.mubr.f32.gmra.mrb[0].mxu0 %v585
        %v653 = vpop.f32.mrb[0].mxu0
        %v654 = vadd.f32 0.0, %v653
        %v655 = vpop.f32.mrb[0].mxu0
        %656 = vdwg.mxu0
        %v657 = vadd.f32 %v584, %v654
        %v658 = vxor.u32 %v657, 2147483648
        %v659 = vmul.f32 %v658, 1.442695
        %v660 = vpow.pop %v659
        %v661 = vadd.f32 %v660, 1.0
        %v662 = vrcp.pop %v661
        %v663 = vmul.f32 1.0, %v662
        %v664 = vadd.f32 %v654, %v440
        %666 = vrot.lane.b32.xlu0 %v664, 64
        %v667 = vpop.permute.xlu0 %666
        %v669 = vmul.f32 %v663, %v667
        %671 = vrot.lane.b32.xlu0 %v669, 64
        %v672 = vpop.permute.xlu0 %671
        %v674 = vadd.f32 %v584, %v672
        %v675 = vtanh.pop %v674
        %v676 = vsub.f32 1.0, %v663
        %678 = vrot.lane.b32.xlu0 %v675, 96
        %v679 = vpop.permute.xlu0 %678
        %v681 = vmul.f32 %v676, %v679
        %v682 = vmul.f32 %v663, %v574
        %v683 = vadd.f32 %v681, %v682
        %685 = vrot.lane.b32.xlu0 %v683, 96
        %v686 = vpop.permute.xlu0 %685
        %s688 = scalar_lea.vmem %s331, %s582 [#allocation8]
        %689 = vst.msk [vmem:[%s688] sm:$0xf] %vm470, %v686
        %s690 = scalar_select %p348, 4, 3
        %s691 = smul.u32 %s690, 4
        %s692 = scalar_lea.vmem %s276, %s691 [#allocation2]
        %v693 = vld [vmem:[%s692] sm:$0xf]
        %v694 = vsel %vm353, %v686, 0
        %696 = vmatprep.subr.mxu0 0.0
        %697 = vmatpush1.msra.mxu0 %v342
        %698 = vmatprep.subr.mxu0 0.0
        %699 = vmatpush1.msra.mxu0 %v343
        %700 = vmatprep.subr.mxu0 0.0
        %701 = vmatpush1.msra.mxu0 %v344
        %702 = vmatprep.subr.mxu0 0.0
        %703 = vmatpush1.msra.mxu0 %v345
        %704 = vmatprep.subr.mxu0 0.0
        %705 = vmatpush1.msra.mxu0 0.0
        %706 = vmatprep.subr.mxu0 0.0
        %707 = vmatpush1.msra.mxu0 0.0
        %708 = vmatprep.subr.mxu0 0.0
        %709 = vmatpush1.msra.mxu0 0.0
        %710 = vmatprep.subr.mxu0 0.0
        %711 = vmatpush1.msra.mxu0 0.0
        %712 = vmatprep.subr.mxu0 0.0
        %713 = vmatpush1.msra.mxu0 0.0
        %714 = vmatprep.subr.mxu0 0.0
        %715 = vmatpush1.msra.mxu0 0.0
        %716 = vmatprep.subr.mxu0 0.0
        %717 = vmatpush1.msra.mxu0 0.0
        %718 = vmatprep.subr.mxu0 0.0
        %719 = vmatpush1.msra.mxu0 0.0
        %720 = vmatprep.subr.mxu0 0.0
        %721 = vmatpush1.msra.mxu0 0.0
        %722 = vmatprep.subr.mxu0 0.0
        %723 = vmatpush1.msra.mxu0 0.0
        %724 = vmatprep.subr.mxu0 0.0
        %725 = vmatpush1.msra.mxu0 0.0
        %726 = vmatprep.subr.mxu0 0.0
        %727 = vmatpush1.msra.mxu0 0.0
        %728 = vmatprep.subr.mxu0 0.0
        %729 = vmatpush1.msra.mxu0 0.0
        %730 = vmatprep.subr.mxu0 0.0
        %731 = vmatpush1.msra.mxu0 0.0
        %732 = vmatprep.subr.mxu0 0.0
        %733 = vmatpush1.msra.mxu0 0.0
        %734 = vmatprep.subr.mxu0 0.0
        %735 = vmatpush1.msra.mxu0 0.0
        %736 = vmatprep.subr.mxu0 0.0
        %737 = vmatpush1.msra.mxu0 0.0
        %738 = vmatprep.subr.mxu0 0.0
        %739 = vmatpush1.msra.mxu0 0.0
        %740 = vmatprep.subr.mxu0 0.0
        %741 = vmatpush1.msra.mxu0 0.0
        %742 = vmatprep.subr.mxu0 0.0
        %743 = vmatpush1.msra.mxu0 0.0
        %744 = vmatprep.subr.mxu0 0.0
        %745 = vmatpush1.msra.mxu0 0.0
        %746 = vmatprep.subr.mxu0 0.0
        %747 = vmatpush1.msra.mxu0 0.0
        %748 = vmatprep.subr.mxu0 0.0
        %749 = vmatpush1.msra.mxu0 0.0
        %750 = vmatprep.subr.mxu0 0.0
        %751 = vmatpush1.msra.mxu0 0.0
        %752 = vmatprep.subr.mxu0 0.0
        %753 = vmatpush1.msra.mxu0 0.0
        %754 = vmatprep.subr.mxu0 0.0
        %755 = vmatpush1.msra.mxu0 0.0
        %756 = vmatprep.subr.mxu0 0.0
        %757 = vmatpush1.msra.mxu0 0.0
        %758 = vmatprep.subr.mxu0 0.0
        %759 = vmatpush1.msra.mxu0 0.0
        %760 = vmatprep.mubr.f32.mxu0 0.0
        %761 = vmatmul.mubr.f32.gmra.mrb[0].mxu0 %v694
        %v762 = vpop.f32.mrb[0].mxu0
        %v763 = vadd.f32 0.0, %v762
        %v764 = vpop.f32.mrb[0].mxu0
        %765 = vdwg.mxu0
        %v766 = vadd.f32 %v693, %v763
        %v767 = vxor.u32 %v766, 2147483648
        %v768 = vmul.f32 %v767, 1.442695
        %v769 = vpow.pop %v768
        %v770 = vadd.f32 %v769, 1.0
        %v771 = vrcp.pop %v770
        %v772 = vmul.f32 1.0, %v771
        %v773 = vadd.f32 %v763, %v440
        %775 = vrot.lane.b32.xlu0 %v773, 64
        %v776 = vpop.permute.xlu0 %775
        %v778 = vmul.f32 %v772, %v776
        %780 = vrot.lane.b32.xlu0 %v778, 64
        %v781 = vpop.permute.xlu0 %780
        %v783 = vadd.f32 %v693, %v781
        %v784 = vtanh.pop %v783
        %v785 = vsub.f32 1.0, %v772
        %787 = vrot.lane.b32.xlu0 %v784, 96
        %v788 = vpop.permute.xlu0 %787
        %v790 = vmul.f32 %v785, %v788
        %v791 = vmul.f32 %v772, %v683
        %v792 = vadd.f32 %v790, %v791
        %794 = vrot.lane.b32.xlu0 %v792, 96
        %v795 = vpop.permute.xlu0 %794
        %s797 = scalar_lea.vmem %s331, %s691 [#allocation8]
        %798 = vst.msk [vmem:[%s797] sm:$0xf] %vm470, %v795
        %s799 = scalar_select %p348, 3, 4
        %s800 = smul.u32 %s799, 4
        %s801 = scalar_lea.vmem %s276, %s800 [#allocation2]
        %v802 = vld [vmem:[%s801] sm:$0xf]
        %v803 = vsel %vm353, %v795, 0
        %805 = vmatprep.subr.mxu0 0.0
        %806 = vmatpush1.msra.mxu0 %v342
        %807 = vmatprep.subr.mxu0 0.0
        %808 = vmatpush1.msra.mxu0 %v343
        %809 = vmatprep.subr.mxu0 0.0
        %810 = vmatpush1.msra.mxu0 %v344
        %811 = vmatprep.subr.mxu0 0.0
        %812 = vmatpush1.msra.mxu0 %v345
        %813 = vmatprep.subr.mxu0 0.0
        %814 = vmatpush1.msra.mxu0 0.0
        %815 = vmatprep.subr.mxu0 0.0
        %816 = vmatpush1.msra.mxu0 0.0
        %817 = vmatprep.subr.mxu0 0.0
        %818 = vmatpush1.msra.mxu0 0.0
        %819 = vmatprep.subr.mxu0 0.0
        %820 = vmatpush1.msra.mxu0 0.0
        %821 = vmatprep.subr.mxu0 0.0
        %822 = vmatpush1.msra.mxu0 0.0
        %823 = vmatprep.subr.mxu0 0.0
        %824 = vmatpush1.msra.mxu0 0.0
        %825 = vmatprep.subr.mxu0 0.0
        %826 = vmatpush1.msra.mxu0 0.0
        %827 = vmatprep.subr.mxu0 0.0
        %828 = vmatpush1.msra.mxu0 0.0
        %829 = vmatprep.subr.mxu0 0.0
        %830 = vmatpush1.msra.mxu0 0.0
        %831 = vmatprep.subr.mxu0 0.0
        %832 = vmatpush1.msra.mxu0 0.0
        %833 = vmatprep.subr.mxu0 0.0
        %834 = vmatpush1.msra.mxu0 0.0
        %835 = vmatprep.subr.mxu0 0.0
        %836 = vmatpush1.msra.mxu0 0.0
        %837 = vmatprep.subr.mxu0 0.0
        %838 = vmatpush1.msra.mxu0 0.0
        %839 = vmatprep.subr.mxu0 0.0
        %840 = vmatpush1.msra.mxu0 0.0
        %841 = vmatprep.subr.mxu0 0.0
        %842 = vmatpush1.msra.mxu0 0.0
        %843 = vmatprep.subr.mxu0 0.0
        %844 = vmatpush1.msra.mxu0 0.0
        %845 = vmatprep.subr.mxu0 0.0
        %846 = vmatpush1.msra.mxu0 0.0
        %847 = vmatprep.subr.mxu0 0.0
        %848 = vmatpush1.msra.mxu0 0.0
        %849 = vmatprep.subr.mxu0 0.0
        %850 = vmatpush1.msra.mxu0 0.0
        %851 = vmatprep.subr.mxu0 0.0
        %852 = vmatpush1.msra.mxu0 0.0
        %853 = vmatprep.subr.mxu0 0.0
        %854 = vmatpush1.msra.mxu0 0.0
        %855 = vmatprep.subr.mxu0 0.0
        %856 = vmatpush1.msra.mxu0 0.0
        %857 = vmatprep.subr.mxu0 0.0
        %858 = vmatpush1.msra.mxu0 0.0
        %859 = vmatprep.subr.mxu0 0.0
        %860 = vmatpush1.msra.mxu0 0.0
        %861 = vmatprep.subr.mxu0 0.0
        %862 = vmatpush1.msra.mxu0 0.0
        %863 = vmatprep.subr.mxu0 0.0
        %864 = vmatpush1.msra.mxu0 0.0
        %865 = vmatprep.subr.mxu0 0.0
        %866 = vmatpush1.msra.mxu0 0.0
        %867 = vmatprep.subr.mxu0 0.0
        %868 = vmatpush1.msra.mxu0 0.0
        %869 = vmatprep.mubr.f32.mxu0 0.0
        %870 = vmatmul.mubr.f32.gmra.mrb[0].mxu0 %v803
        %v871 = vpop.f32.mrb[0].mxu0
        %v872 = vadd.f32 0.0, %v871
        %v873 = vpop.f32.mrb[0].mxu0
        %874 = vdwg.mxu0
        %v875 = vadd.f32 %v802, %v872
        %v876 = vxor.u32 %v875, 2147483648
        %v877 = vmul.f32 %v876, 1.442695
        %v878 = vpow.pop %v877
        %v879 = vadd.f32 %v878, 1.0
        %v880 = vrcp.pop %v879
        %v881 = vmul.f32 1.0, %v880
        %v882 = vadd.f32 %v872, %v440
        %884 = vrot.lane.b32.xlu0 %v882, 64
        %v885 = vpop.permute.xlu0 %884
        %v887 = vmul.f32 %v881, %v885
        %889 = vrot.lane.b32.xlu0 %v887, 64
        %v890 = vpop.permute.xlu0 %889
        %v892 = vadd.f32 %v802, %v890
        %v893 = vtanh.pop %v892
        %v894 = vsub.f32 1.0, %v881
        %896 = vrot.lane.b32.xlu0 %v893, 96
        %v897 = vpop.permute.xlu0 %896
        %v899 = vmul.f32 %v894, %v897
        %v900 = vmul.f32 %v881, %v792
        %v901 = vadd.f32 %v899, %v900
        %903 = vrot.lane.b32.xlu0 %v901, 96
        %v904 = vpop.permute.xlu0 %903
        %s906 = scalar_lea.vmem %s331, %s800 [#allocation8]
        %907 = vst.msk [vmem:[%s906] sm:$0xf] %vm470, %v904
        %s908 = scalar_select %p348, 2, 5
        %s909 = smul.u32 %s908, 4
        %s910 = scalar_lea.vmem %s276, %s909 [#allocation2]
        %v911 = vld [vmem:[%s910] sm:$0xf]
        %v912 = vsel %vm353, %v904, 0
        %914 = vmatprep.subr.mxu0 0.0
        %915 = vmatpush1.msra.mxu0 %v342
        %916 = vmatprep.subr.mxu0 0.0
        %917 = vmatpush1.msra.mxu0 %v343
        %918 = vmatprep.subr.mxu0 0.0
        %919 = vmatpush1.msra.mxu0 %v344
        %920 = vmatprep.subr.mxu0 0.0
        %921 = vmatpush1.msra.mxu0 %v345
        %922 = vmatprep.subr.mxu0 0.0
        %923 = vmatpush1.msra.mxu0 0.0
        %924 = vmatprep.subr.mxu0 0.0
        %925 = vmatpush1.msra.mxu0 0.0
        %926 = vmatprep.subr.mxu0 0.0
        %927 = vmatpush1.msra.mxu0 0.0
        %928 = vmatprep.subr.mxu0 0.0
        %929 = vmatpush1.msra.mxu0 0.0
        %930 = vmatprep.subr.mxu0 0.0
        %931 = vmatpush1.msra.mxu0 0.0
        %932 = vmatprep.subr.mxu0 0.0
        %933 = vmatpush1.msra.mxu0 0.0
        %934 = vmatprep.subr.mxu0 0.0
        %935 = vmatpush1.msra.mxu0 0.0
        %936 = vmatprep.subr.mxu0 0.0
        %937 = vmatpush1.msra.mxu0 0.0
        %938 = vmatprep.subr.mxu0 0.0
        %939 = vmatpush1.msra.mxu0 0.0
        %940 = vmatprep.subr.mxu0 0.0
        %941 = vmatpush1.msra.mxu0 0.0
        %942 = vmatprep.subr.mxu0 0.0
        %943 = vmatpush1.msra.mxu0 0.0
        %944 = vmatprep.subr.mxu0 0.0
        %945 = vmatpush1.msra.mxu0 0.0
        %946 = vmatprep.subr.mxu0 0.0
        %947 = vmatpush1.msra.mxu0 0.0
        %948 = vmatprep.subr.mxu0 0.0
        %949 = vmatpush1.msra.mxu0 0.0
        %950 = vmatprep.subr.mxu0 0.0
        %951 = vmatpush1.msra.mxu0 0.0
        %952 = vmatprep.subr.mxu0 0.0
        %953 = vmatpush1.msra.mxu0 0.0
        %954 = vmatprep.subr.mxu0 0.0
        %955 = vmatpush1.msra.mxu0 0.0
        %956 = vmatprep.subr.mxu0 0.0
        %957 = vmatpush1.msra.mxu0 0.0
        %958 = vmatprep.subr.mxu0 0.0
        %959 = vmatpush1.msra.mxu0 0.0
        %960 = vmatprep.subr.mxu0 0.0
        %961 = vmatpush1.msra.mxu0 0.0
        %962 = vmatprep.subr.mxu0 0.0
        %963 = vmatpush1.msra.mxu0 0.0
        %964 = vmatprep.subr.mxu0 0.0
        %965 = vmatpush1.msra.mxu0 0.0
        %966 = vmatprep.subr.mxu0 0.0
        %967 = vmatpush1.msra.mxu0 0.0
        %968 = vmatprep.subr.mxu0 0.0
        %969 = vmatpush1.msra.mxu0 0.0
        %970 = vmatprep.subr.mxu0 0.0
        %971 = vmatpush1.msra.mxu0 0.0
        %972 = vmatprep.subr.mxu0 0.0
        %973 = vmatpush1.msra.mxu0 0.0
        %974 = vmatprep.subr.mxu0 0.0
        %975 = vmatpush1.msra.mxu0 0.0
        %976 = vmatprep.subr.mxu0 0.0
        %977 = vmatpush1.msra.mxu0 0.0
        %978 = vmatprep.mubr.f32.mxu0 0.0
        %979 = vmatmul.mubr.f32.gmra.mrb[0].mxu0 %v912
        %v980 = vpop.f32.mrb[0].mxu0
        %v981 = vadd.f32 0.0, %v980
        %v982 = vpop.f32.mrb[0].mxu0
        %983 = vdwg.mxu0
        %v984 = vadd.f32 %v911, %v981
        %v985 = vxor.u32 %v984, 2147483648
        %v986 = vmul.f32 %v985, 1.442695
        %v987 = vpow.pop %v986
        %v988 = vadd.f32 %v987, 1.0
        %v989 = vrcp.pop %v988
        %v990 = vmul.f32 1.0, %v989
        %v991 = vadd.f32 %v981, %v440
        %993 = vrot.lane.b32.xlu0 %v991, 64
        %v994 = vpop.permute.xlu0 %993
        %v996 = vmul.f32 %v990, %v994
        %998 = vrot.lane.b32.xlu0 %v996, 64
        %v999 = vpop.permute.xlu0 %998
        %v1001 = vadd.f32 %v911, %v999
        %v1002 = vtanh.pop %v1001
        %v1003 = vsub.f32 1.0, %v990
        %1005 = vrot.lane.b32.xlu0 %v1002, 96
        %v1006 = vpop.permute.xlu0 %1005
        %v1008 = vmul.f32 %v1003, %v1006
        %v1009 = vmul.f32 %v990, %v901
        %v1010 = vadd.f32 %v1008, %v1009
        %1012 = vrot.lane.b32.xlu0 %v1010, 96
        %v1013 = vpop.permute.xlu0 %1012
        %s1015 = scalar_lea.vmem %s331, %s909 [#allocation8]
        %1016 = vst.msk [vmem:[%s1015] sm:$0xf] %vm470, %v1013
        %s1017 = scalar_select %p348, 1, 6
        %s1018 = smul.u32 %s1017, 4
        %s1019 = scalar_lea.vmem %s276, %s1018 [#allocation2]
        %v1020 = vld [vmem:[%s1019] sm:$0xf]
        %v1021 = vsel %vm353, %v1013, 0
        %1023 = vmatprep.subr.mxu0 0.0
        %1024 = vmatpush1.msra.mxu0 %v342
        %1025 = vmatprep.subr.mxu0 0.0
        %1026 = vmatpush1.msra.mxu0 %v343
        %1027 = vmatprep.subr.mxu0 0.0
        %1028 = vmatpush1.msra.mxu0 %v344
        %1029 = vmatprep.subr.mxu0 0.0
        %1030 = vmatpush1.msra.mxu0 %v345
        %1031 = vmatprep.subr.mxu0 0.0
        %1032 = vmatpush1.msra.mxu0 0.0
        %1033 = vmatprep.subr.mxu0 0.0
        %1034 = vmatpush1.msra.mxu0 0.0
        %1035 = vmatprep.subr.mxu0 0.0
        %1036 = vmatpush1.msra.mxu0 0.0
        %1037 = vmatprep.subr.mxu0 0.0
        %1038 = vmatpush1.msra.mxu0 0.0
        %1039 = vmatprep.subr.mxu0 0.0
        %1040 = vmatpush1.msra.mxu0 0.0
        %1041 = vmatprep.subr.mxu0 0.0
        %1042 = vmatpush1.msra.mxu0 0.0
        %1043 = vmatprep.subr.mxu0 0.0
        %1044 = vmatpush1.msra.mxu0 0.0
        %1045 = vmatprep.subr.mxu0 0.0
        %1046 = vmatpush1.msra.mxu0 0.0
        %1047 = vmatprep.subr.mxu0 0.0
        %1048 = vmatpush1.msra.mxu0 0.0
        %1049 = vmatprep.subr.mxu0 0.0
        %1050 = vmatpush1.msra.mxu0 0.0
        %1051 = vmatprep.subr.mxu0 0.0
        %1052 = vmatpush1.msra.mxu0 0.0
        %1053 = vmatprep.subr.mxu0 0.0
        %1054 = vmatpush1.msra.mxu0 0.0
        %1055 = vmatprep.subr.mxu0 0.0
        %1056 = vmatpush1.msra.mxu0 0.0
        %1057 = vmatprep.subr.mxu0 0.0
        %1058 = vmatpush1.msra.mxu0 0.0
        %1059 = vmatprep.subr.mxu0 0.0
        %1060 = vmatpush1.msra.mxu0 0.0
        %1061 = vmatprep.subr.mxu0 0.0
        %1062 = vmatpush1.msra.mxu0 0.0
        %1063 = vmatprep.subr.mxu0 0.0
        %1064 = vmatpush1.msra.mxu0 0.0
        %1065 = vmatprep.subr.mxu0 0.0
        %1066 = vmatpush1.msra.mxu0 0.0
        %1067 = vmatprep.subr.mxu0 0.0
        %1068 = vmatpush1.msra.mxu0 0.0
        %1069 = vmatprep.subr.mxu0 0.0
        %1070 = vmatpush1.msra.mxu0 0.0
        %1071 = vmatprep.subr.mxu0 0.0
        %1072 = vmatpush1.msra.mxu0 0.0
        %1073 = vmatprep.subr.mxu0 0.0
        %1074 = vmatpush1.msra.mxu0 0.0
        %1075 = vmatprep.subr.mxu0 0.0
        %1076 = vmatpush1.msra.mxu0 0.0
        %1077 = vmatprep.subr.mxu0 0.0
        %1078 = vmatpush1.msra.mxu0 0.0
        %1079 = vmatprep.subr.mxu0 0.0
        %1080 = vmatpush1.msra.mxu0 0.0
        %1081 = vmatprep.subr.mxu0 0.0
        %1082 = vmatpush1.msra.mxu0 0.0
        %1083 = vmatprep.subr.mxu0 0.0
        %1084 = vmatpush1.msra.mxu0 0.0
        %1085 = vmatprep.subr.mxu0 0.0
        %1086 = vmatpush1.msra.mxu0 0.0
        %1087 = vmatprep.mubr.f32.mxu0 0.0
        %1088 = vmatmul.mubr.f32.gmra.mrb[0].mxu0 %v1021
        %v1089 = vpop.f32.mrb[0].mxu0
        %v1090 = vadd.f32 0.0, %v1089
        %v1091 = vpop.f32.mrb[0].mxu0
        %1092 = vdwg.mxu0
        %v1093 = vadd.f32 %v1020, %v1090
        %v1094 = vxor.u32 %v1093, 2147483648
        %v1095 = vmul.f32 %v1094, 1.442695
        %v1096 = vpow.pop %v1095
        %v1097 = vadd.f32 %v1096, 1.0
        %v1098 = vrcp.pop %v1097
        %v1099 = vmul.f32 1.0, %v1098
        %v1100 = vadd.f32 %v1090, %v440
        %1102 = vrot.lane.b32.xlu0 %v1100, 64
        %v1103 = vpop.permute.xlu0 %1102
        %v1105 = vmul.f32 %v1099, %v1103
        %1107 = vrot.lane.b32.xlu0 %v1105, 64
        %v1108 = vpop.permute.xlu0 %1107
        %v1110 = vadd.f32 %v1020, %v1108
        %v1111 = vtanh.pop %v1110
        %v1112 = vsub.f32 1.0, %v1099
        %1114 = vrot.lane.b32.xlu0 %v1111, 96
        %v1115 = vpop.permute.xlu0 %1114
        %v1117 = vmul.f32 %v1112, %v1115
        %v1118 = vmul.f32 %v1099, %v1010
        %v1119 = vadd.f32 %v1117, %v1118
        %1121 = vrot.lane.b32.xlu0 %v1119, 96
        %v1122 = vpop.permute.xlu0 %1121
        %s1124 = scalar_lea.vmem %s331, %s1018 [#allocation8]
        %1125 = vst.msk [vmem:[%s1124] sm:$0xf] %vm470, %v1122
        %s1126 = scalar_select %p348, 0, 7
        %s1127 = smul.u32 %s1126, 4
        %s1128 = scalar_lea.vmem %s276, %s1127 [#allocation2]
        %v1129 = vld [vmem:[%s1128] sm:$0xf]
        %v1130 = vsel %vm353, %v1122, 0
        %1132 = vmatprep.subr.mxu0 0.0
        %1133 = vmatpush1.msra.mxu0 %v342
        %1134 = vmatprep.subr.mxu0 0.0
        %1135 = vmatpush1.msra.mxu0 %v343
        %1136 = vmatprep.subr.mxu0 0.0
        %1137 = vmatpush1.msra.mxu0 %v344
        %1138 = vmatprep.subr.mxu0 0.0
        %1139 = vmatpush1.msra.mxu0 %v345
        %1140 = vmatprep.subr.mxu0 0.0
        %1141 = vmatpush1.msra.mxu0 0.0
        %1142 = vmatprep.subr.mxu0 0.0
        %1143 = vmatpush1.msra.mxu0 0.0
        %1144 = vmatprep.subr.mxu0 0.0
        %1145 = vmatpush1.msra.mxu0 0.0
        %1146 = vmatprep.subr.mxu0 0.0
        %1147 = vmatpush1.msra.mxu0 0.0
        %1148 = vmatprep.subr.mxu0 0.0
        %1149 = vmatpush1.msra.mxu0 0.0
        %1150 = vmatprep.subr.mxu0 0.0
        %1151 = vmatpush1.msra.mxu0 0.0
        %1152 = vmatprep.subr.mxu0 0.0
        %1153 = vmatpush1.msra.mxu0 0.0
        %1154 = vmatprep.subr.mxu0 0.0
        %1155 = vmatpush1.msra.mxu0 0.0
        %1156 = vmatprep.subr.mxu0 0.0
        %1157 = vmatpush1.msra.mxu0 0.0
        %1158 = vmatprep.subr.mxu0 0.0
        %1159 = vmatpush1.msra.mxu0 0.0
        %1160 = vmatprep.subr.mxu0 0.0
        %1161 = vmatpush1.msra.mxu0 0.0
        %1162 = vmatprep.subr.mxu0 0.0
        %1163 = vmatpush1.msra.mxu0 0.0
        %1164 = vmatprep.subr.mxu0 0.0
        %1165 = vmatpush1.msra.mxu0 0.0
        %1166 = vmatprep.subr.mxu0 0.0
        %1167 = vmatpush1.msra.mxu0 0.0
        %1168 = vmatprep.subr.mxu0 0.0
        %1169 = vmatpush1.msra.mxu0 0.0
        %1170 = vmatprep.subr.mxu0 0.0
        %1171 = vmatpush1.msra.mxu0 0.0
        %1172 = vmatprep.subr.mxu0 0.0
        %1173 = vmatpush1.msra.mxu0 0.0
        %1174 = vmatprep.subr.mxu0 0.0
        %1175 = vmatpush1.msra.mxu0 0.0
        %1176 = vmatprep.subr.mxu0 0.0
        %1177 = vmatpush1.msra.mxu0 0.0
        %1178 = vmatprep.subr.mxu0 0.0
        %1179 = vmatpush1.msra.mxu0 0.0
        %1180 = vmatprep.subr.mxu0 0.0
        %1181 = vmatpush1.msra.mxu0 0.0
        %1182 = vmatprep.subr.mxu0 0.0
        %1183 = vmatpush1.msra.mxu0 0.0
        %1184 = vmatprep.subr.mxu0 0.0
        %1185 = vmatpush1.msra.mxu0 0.0
        %1186 = vmatprep.subr.mxu0 0.0
        %1187 = vmatpush1.msra.mxu0 0.0
        %1188 = vmatprep.subr.mxu0 0.0
        %1189 = vmatpush1.msra.mxu0 0.0
        %1190 = vmatprep.subr.mxu0 0.0
        %1191 = vmatpush1.msra.mxu0 0.0
        %1192 = vmatprep.subr.mxu0 0.0
        %1193 = vmatpush1.msra.mxu0 0.0
        %1194 = vmatprep.subr.mxu0 0.0
        %1195 = vmatpush1.msra.mxu0 0.0
        %1196 = vmatprep.mubr.f32.mxu0 0.0
        %1197 = vmatmul.mubr.f32.gmra.mrb[0].mxu0 %v1130
        %v1198 = vpop.f32.mrb[0].mxu0
        %v1199 = vadd.f32 0.0, %v1198
        %v1200 = vpop.f32.mrb[0].mxu0
        %1201 = vdwg.mxu0
        %v1202 = vadd.f32 %v1129, %v1199
        %v1203 = vxor.u32 %v1202, 2147483648
        %v1204 = vmul.f32 %v1203, 1.442695
        %v1205 = vpow.pop %v1204
        %v1206 = vadd.f32 %v1205, 1.0
        %v1207 = vrcp.pop %v1206
        %v1208 = vmul.f32 1.0, %v1207
        %v1209 = vadd.f32 %v1199, %v440
        %1211 = vrot.lane.b32.xlu0 %v1209, 64
        %v1212 = vpop.permute.xlu0 %1211
        %v1214 = vmul.f32 %v1208, %v1212
        %1216 = vrot.lane.b32.xlu0 %v1214, 64
        %v1217 = vpop.permute.xlu0 %1216
        %v1219 = vadd.f32 %v1129, %v1217
        %v1220 = vtanh.pop %v1219
        %v1221 = vsub.f32 1.0, %v1208
        %1223 = vrot.lane.b32.xlu0 %v1220, 96
        %v1224 = vpop.permute.xlu0 %1223
        %v1226 = vmul.f32 %v1221, %v1224
        %v1227 = vmul.f32 %v1208, %v1119
        %v1228 = vadd.f32 %v1226, %v1227
        %1230 = vrot.lane.b32.xlu0 %v1228, 96
        %v1231 = vpop.permute.xlu0 %1230
        %s1233 = scalar_lea.vmem %s331, %s1127 [#allocation8]
        %1234 = vst.msk [vmem:[%s1233] sm:$0xf] %vm470, %v1231
        %1235 = vst.msk [vmem:[%s338] sm:$0xf] %vm470, %v1231
        %s1236 = sand.u32 %s141, 1
        %s1237 = scalar_lea.sflag [#allocation4], %s1236
        %s1238 = sand.u32 %s141, 1
        %s1239 = smul.addr %s1238, 32
        %s1240 = scalar_lea.vmem [#allocation8], %s1239
        %s1241 = sand.u32 %s167, 1
        %s1242 = scalar_lea.sflag [#allocation10], %s1241
        %s1243 = sand.u32 %s167, 1
        %s1244 = smul.addr %s1243, 4
        %s1245 = scalar_lea.vmem [#allocation9], %s1244
        // Predicated region
        $region49: #{tpu_custom_call.1} parent=35 // pred_check
          %p1246 = pneg %p151
        $region50: #{tpu_custom_call.1} parent=35 // pred_check_branch
          %1248 = sbr.rel (%p1246) target = $region52
        $region51: #{tpu_custom_call.1} parent=35 // pred_region
          %s1250 = ssub.s32 512, 512
          %1251 = vsyncadd %s1237, %s1250
          %s1252 = smul.addr %s29, 8
          %s1253 = smul.addr %s1252, 64
          %s1254 = scalar_lea.hbm %s4, %s1253
          %s1255 = sshll.u32 %s1240, 4
          %s1256 = int_to_ptr.vmem [resolvable:$true] %s1255
          %1261 = dma.vmem_to_hbm [thread:$0]  %s1256, 512, %s1254, %s1237, 64, 64, 4
        $region52: #{tpu_custom_call.1} parent=35 // pred_fallthru
          _
        // Predicated region
        $region53: #{tpu_custom_call.1} parent=35 // pred_check
          %p1262 = pneg %p177
        $region54: #{tpu_custom_call.1} parent=35 // pred_check_branch
          %1264 = sbr.rel (%p1262) target = $region56
        $region55: #{tpu_custom_call.1} parent=35 // pred_region
          %s1266 = ssub.s32 64, 64
          %1267 = vsyncadd %s1242, %s1266
          %s1268 = smul.addr %s29, 64
          %s1269 = scalar_lea.hbm %s5, %s1268
          %s1271 = sshll.u32 %s1245, 4
          %s1272 = int_to_ptr.vmem [resolvable:$true] %s1271
          %1274 = dma.vmem_to_hbm [thread:$0]  %s1272, 64, %s1269, %s1242
        $region56: #{tpu_custom_call.1} parent=35 // pred_fallthru
          _
      $region36: #{tpu_custom_call.1} parent=5 // pred_fallthru
        _
      %p1275 = scmp.le.s32.totalorder 2, %s24
      // Predicated region
      $region57: #{tpu_custom_call.1} parent=5 // pred_check
        %p1276 = pneg %p1275
      $region58: #{tpu_custom_call.1} parent=5 // pred_check_branch
        %1278 = sbr.rel (%p1276) target = $region60
      $region59: #{tpu_custom_call.1} parent=5 // pred_region
        %s1279 = ssub.s32 %s24, 2
        // Predicated region
        $region61: #{tpu_custom_call.1} parent=59 // pred_check
          %p1280 = pneg %p157
        $region62: #{tpu_custom_call.1} parent=59 // pred_check_branch
          %1282 = sbr.rel (%p1280) target = $region64
        $region63: #{tpu_custom_call.1} parent=59 // pred_region
          %s1283 = sand.u32 %s142, 1
          %s1284 = scalar_lea.sflag [#allocation4], %s1283
          %s1285 = sand.u32 %s142, 1
          %s1286 = smul.addr %s1285, 32
          %s1287 = scalar_lea.vmem [#allocation8], %s1286
          %1288 = dma.done %s1284, 512
        $region64: #{tpu_custom_call.1} parent=59 // pred_fallthru
          _
        // Predicated region
        $region65: #{tpu_custom_call.1} parent=59 // pred_check
          %p1289 = pneg %p183
        $region66: #{tpu_custom_call.1} parent=59 // pred_check_branch
          %1291 = sbr.rel (%p1289) target = $region68
        $region67: #{tpu_custom_call.1} parent=59 // pred_region
          %s1292 = sand.u32 %s168, 1
          %s1293 = scalar_lea.sflag [#allocation10], %s1292
          %s1294 = sand.u32 %s168, 1
          %s1295 = smul.addr %s1294, 4
          %s1296 = scalar_lea.vmem [#allocation9], %s1295
          %1297 = dma.done %s1293, 64
        $region68: #{tpu_custom_call.1} parent=59 // pred_fallthru
          _
      $region60: #{tpu_custom_call.1} parent=5 // pred_fallthru
        _
    $region6: #{tpu_custom_call.1} parent=1 // loop_footer
      %s28 = sadd.s32 1, %s24
    $region7: #{tpu_custom_call.1} parent=1 // loop_footer_branch
      %23 = sbr.rel target = $region3
    $region8: #{tpu_custom_call.1} parent=1 // loop_exit
      _
    %1298 = vsyncpa [#allocation3], 1
    %s1299 = scalar_lea.sflag [#allocation3], 1
    %1300 = vsyncpa %s1299, 1
    %1301 = vsyncpa [#allocation6], 1
    %s1302 = scalar_lea.sflag [#allocation6], 1
    %1303 = vsyncpa %s1302, 1
    %1304 = vsyncpa [#allocation4], 1
    %s1305 = scalar_lea.sflag [#allocation4], 1
    %1306 = vsyncpa %s1305, 1
    %1307 = vsyncpa [#allocation10], 1
    %s1308 = scalar_lea.sflag [#allocation10], 1
    %1309 = vsyncpa %s1308, 1

</llo_original>
